<compile_context>
chip_gen: v7x
topology: tpu7x:2x2x1
jax: 0.10.0
libtpu: 0.0.40
codegen_flags: <defaults>
</compile_context>

<pallas_src>
import jax
import jax.numpy as jnp
from jax.experimental import pallas as pl
from jax.experimental.pallas import tpu as pltpu

# --- config (mirrors get_config() in the PyTorch file) ---
H = 128    # hidden size
K = 100    # fc1 output features
M = 2      # M_F_num (motion feature count == LSTM input size)
T = 6      # timeStep
KP = 128   # K padded to lane width (kernel-internal only)
NP = 128   # fc2 output (2) padded to lane width (kernel-internal only)


def motion_lstm_kernel(track_ref, target_ref,
                       wt_ref, bt_ref,
                       wih_ref, bgates_ref, whh_ref,
                       wfc1h_ref, wfc1t_ref, bfc1_ref,
                       wfc2_ref, bfc2_ref,
                       outs_ref, relu_ref):
    f32 = jnp.float32
    Bp = target_ref.shape[0]          # padded batch (multiple of 8 sublanes)

    # ---- loop-invariant precompute (kept off the recurrence critical path) ----
    # Input-path gate contribution for every timestep.  The contraction depth is only
    # M=2, so do it on the VPU with broadcast FMAs instead of an MXU push; the gate
    # bias (bih + bhh, pre-summed in prepare_params) is added once here.
    track = track_ref[...]            # (T*Bp, M), t-major rows
    wih = wih_ref[...]                # (M, 4H)
    gx = sum(track[:, m:m + 1] * wih[m:m + 1, :] for m in range(M)) \
        + bgates_ref[...]             # (T*Bp, 4H)

    # target_fc and its (loop-invariant) fc1 contribution, computed once.
    target = target_ref[...]          # (Bp, M)
    wt = wt_ref[...]                  # (M, H)
    target_out = sum(target[:, m:m + 1] * wt[m:m + 1, :] for m in range(M)) \
        + bt_ref[...]                 # (Bp, H)
    fc1_t = (jnp.dot(target_out, wfc1t_ref[...], preferred_element_type=f32)
             + bfc1_ref[...])         # (Bp, KP)

    whh = whh_ref[...]                # (H, 4H)

    # ---- LSTM recurrence: only `h @ whh` + gate nonlinearities per step ----
    h = jnp.zeros((Bp, H), f32)
    c = jnp.zeros((Bp, H), f32)
    hs = []
    for t in range(T):  # static unroll, T = 6
        gates = gx[t * Bp:(t + 1) * Bp, :] + jnp.dot(h, whh, preferred_element_type=f32)
        i_g = jax.nn.sigmoid(gates[:, 0 * H:1 * H])
        f_g = jax.nn.sigmoid(gates[:, 1 * H:2 * H])
        g_g = jnp.tanh(gates[:, 2 * H:3 * H])
        o_g = jax.nn.sigmoid(gates[:, 3 * H:4 * H])
        c = f_g * c + i_g * g_g
        h = o_g * jnp.tanh(c)                                         # r_out[:, t, :]
        hs.append(h)

    # ---- fc1 / relu / fc2 head, batched over all timesteps (rows are t-major) ----
    h_all = jnp.concatenate(hs, axis=0)                               # (T*Bp, H), 8-aligned
    fc1 = jnp.dot(h_all, wfc1h_ref[...], preferred_element_type=f32)  # (T*Bp, KP)
    # single broadcast add of the loop-invariant target contribution (no T-way concat)
    fc1 = (fc1.reshape(T, Bp, KP) + fc1_t[None, :, :]).reshape(T * Bp, KP)
    relu = jnp.maximum(fc1, 0.0)
    outs = jnp.dot(relu, wfc2_ref[...], preferred_element_type=f32) + bfc2_ref[...]

    # ---- stores: b-major (Bp, T*128) slabs; each write is one full (8,128)-aligned,
    #      lane-dense tile, so the wrapper only needs reshape + slice (no transpose) ----
    for t in range(T):
        relu_ref[:, t * KP:(t + 1) * KP] = relu[t * Bp:(t + 1) * Bp, :]
        outs_ref[:, t * NP:(t + 1) * NP] = outs[t * Bp:(t + 1) * Bp, :]


def prepare_params(p):
    """One-time parameter preprocessing (hoisted out of the per-call jitted wrapper):
    pad fc1/fc2 to 128 output lanes and pre-sum the LSTM gate biases."""
    return {
        "wt": p["wt"],
        "bt": p["bt"],
        "wih": p["wih"],
        "bgates": p["bih"] + p["bhh"],
        "whh": p["whh"],
        "wfc1h": jnp.pad(p["wfc1h"], ((0, 0), (0, KP - K))),
        "wfc1t": jnp.pad(p["wfc1t"], ((0, 0), (0, KP - K))),
        "bfc1": jnp.pad(p["bfc1"], ((0, 0), (0, KP - K))),
        "wfc2": jnp.pad(p["wfc2"], ((0, KP - K), (0, NP - 2))),
        "bfc2": jnp.pad(p["bfc2"], ((0, 0), (0, NP - 2))),
    }


@jax.jit
def motion_lstm(track, target, pp):
    B = track.shape[0]
    B_PAD = max(8, -(-B // 8) * 8)   # round batch up to a multiple of 8 sublanes

    # ---- lightweight per-call input prep ----
    track_p = jnp.pad(track, ((0, B_PAD - B), (0, 0), (0, 0)))
    target_p = jnp.pad(target, ((0, B_PAD - B), (0, 0)))
    # t-major flattened track: row t*B_PAD + b == track[b, t, :]
    track_flat = jnp.transpose(track_p, (1, 0, 2)).reshape(T * B_PAD, M)

    args = (track_flat, target_p,
            pp["wt"], pp["bt"],
            pp["wih"], pp["bgates"], pp["whh"],
            pp["wfc1h"], pp["wfc1t"], pp["bfc1"],
            pp["wfc2"], pp["bfc2"])
    vmem = lambda: pl.BlockSpec(memory_space=pltpu.MemorySpace.VMEM)
    # NOTE: B is a handful of tracks here (kernel is launch/latency bound); batching
    # many tracks per call amortizes the fixed overhead almost linearly.
    outs_pad, relu_pad = pl.pallas_call(
        motion_lstm_kernel,
        out_shape=(jax.ShapeDtypeStruct((B_PAD, T * NP), jnp.float32),   # padded outs
                   jax.ShapeDtypeStruct((B_PAD, T * KP), jnp.float32)),  # padded relu_outs
        in_specs=[vmem() for _ in args],
        out_specs=(vmem(), vmem()),
    )(*args)

    # trivial reshape (lane-dim split) + slice; no post-kernel transpose needed.
    outs = outs_pad.reshape(B_PAD, T, NP)[:B, :, :2]
    relu_outs = relu_pad.reshape(B_PAD, T, KP)[:B, :, :K]
    return outs, relu_outs


def init_params(key):
    """Deterministic synthetic parameters with PyTorch-style uniform init ranges."""
    ks = jax.random.split(key, 12)
    u = lambda k, shape, bound: jax.random.uniform(k, shape, jnp.float32, -bound, bound)
    s_m = 1.0 / jnp.sqrt(M)       # Linear(M, H)
    s_h = 1.0 / jnp.sqrt(H)       # LSTM params
    s_2h = 1.0 / jnp.sqrt(2 * H)  # Linear(2H, K)
    s_k = 1.0 / jnp.sqrt(K)       # Linear(K, 2)
    wfc1 = u(ks[8], (2 * H, K), s_2h)
    return {
        # target_fc
        "wt":  u(ks[0], (M, H), s_m),
        "bt":  u(ks[1], (1, H), s_m),
        # LSTM (weights stored transposed: (in, 4H) / (H, 4H)), gate order [i, f, g, o]
        "wih": u(ks[2], (M, 4 * H), s_h),
        "bih": u(ks[3], (1, 4 * H), s_h),
        "whh": u(ks[4], (H, 4 * H), s_h),
        "bhh": u(ks[5], (1, 4 * H), s_h),
        # fc1 split into the h-part and the target-part of the concatenated input
        "wfc1h": wfc1[:H, :],
        "wfc1t": wfc1[H:, :],
        "bfc1":  u(ks[9], (1, K), s_2h),
        # fc2
        "wfc2": u(ks[10], (K, 2), s_k),
        "bfc2": u(ks[11], (1, 2), s_k),
    }


def reference(track, target, p):
    """Plain-JAX replica of the PyTorch forward, for correctness checking."""
    target_out = target @ p["wt"] + p["bt"]
    B = track.shape[0]
    h = jnp.zeros((B, H), jnp.float32)
    c = jnp.zeros((B, H), jnp.float32)
    r_out = []
    for t in range(T):
        x = track[:, t, :]
        gates = x @ p["wih"] + h @ p["whh"] + p["bih"] + p["bhh"]
        i = jax.nn.sigmoid(gates[:, :H])
        f = jax.nn.sigmoid(gates[:, H:2 * H])
        g = jnp.tanh(gates[:, 2 * H:3 * H])
        o = jax.nn.sigmoid(gates[:, 3 * H:])
        c = f * c + i * g
        h = o * jnp.tanh(c)
        r_out.append(h)
    outs, relus = [], []
    for t in range(T):
        combined = jnp.concatenate([r_out[t], target_out], axis=1)
        fc1 = combined[:, :H] @ p["wfc1h"] + combined[:, H:] @ p["wfc1t"] + p["bfc1"]
        relu = jnp.maximum(fc1, 0.0)
        relus.append(relu)
        outs.append(relu @ p["wfc2"] + p["bfc2"])
    return jnp.stack(outs, axis=1), jnp.stack(relus, axis=1)


if __name__ == "__main__":
    key = jax.random.PRNGKey(0)
    k_track, k_target, k_params = jax.random.split(key, 3)

    B = 2
    track_input = jax.random.normal(k_track, (B, T, M), jnp.float32)
    target_input = jax.random.normal(k_target, (B, M), jnp.float32)
    params = init_params(k_params)

    # one-time weight prep (padding, bias pre-sum) hoisted out of the per-call path
    prepped = jax.block_until_ready(prepare_params(params))

    outs, relu_outs = motion_lstm(track_input, target_input, prepped)
    jax.block_until_ready((outs, relu_outs))

    ref_outs, ref_relu = reference(track_input, target_input, params)
    assert outs.shape == (B, T, 2) and relu_outs.shape == (B, T, K)
    assert jnp.allclose(outs, ref_outs, atol=1e-4, rtol=1e-4)
    assert jnp.allclose(relu_outs, ref_relu, atol=1e-4, rtol=1e-4)

    print("KERNEL_OK")
</pallas_src>

<mosaic_0001>
module attributes {stable_mosaic.version = 11 : i64} {
  func.func @motion_lstm_kernel(%arg0: memref<48x2xf32, #tpu.memory_space<vmem>>, %arg1: memref<8x2xf32, #tpu.memory_space<vmem>>, %arg2: memref<2x128xf32, #tpu.memory_space<vmem>>, %arg3: memref<1x128xf32, #tpu.memory_space<vmem>>, %arg4: memref<2x512xf32, #tpu.memory_space<vmem>>, %arg5: memref<1x512xf32, #tpu.memory_space<vmem>>, %arg6: memref<128x512xf32, #tpu.memory_space<vmem>>, %arg7: memref<128x128xf32, #tpu.memory_space<vmem>>, %arg8: memref<128x128xf32, #tpu.memory_space<vmem>>, %arg9: memref<1x128xf32, #tpu.memory_space<vmem>>, %arg10: memref<128x128xf32, #tpu.memory_space<vmem>>, %arg11: memref<1x128xf32, #tpu.memory_space<vmem>>, %arg12: memref<8x768xf32, #tpu.memory_space<vmem>>, %arg13: memref<8x768xf32, #tpu.memory_space<vmem>>) attributes {dimension_semantics = [], scalar_prefetch = 0 : i64, scratch_operands = 0 : i64, tpu.core_type = #tpu.core_type<tc>} {
    %c0 = arith.constant 0 : index
    %c0_0 = arith.constant 0 : index
    %0 = vector.load %arg0[%c0, %c0_0] : memref<48x2xf32, #tpu.memory_space<vmem>>, vector<48x2xf32>
    %c0_1 = arith.constant 0 : index
    %c0_2 = arith.constant 0 : index
    %1 = vector.load %arg4[%c0_1, %c0_2] : memref<2x512xf32, #tpu.memory_space<vmem>>, vector<2x512xf32>
    %2 = vector.extract_strided_slice %0 {offsets = [0, 0], sizes = [48, 1], strides = [1, 1]} : vector<48x2xf32> to vector<48x1xf32>
    %3 = vector.extract_strided_slice %1 {offsets = [0, 0], sizes = [1, 512], strides = [1, 1]} : vector<2x512xf32> to vector<1x512xf32>
    %4 = vector.broadcast %2 : vector<48x1xf32> to vector<48x512xf32>
    %5 = vector.broadcast %3 : vector<1x512xf32> to vector<48x512xf32>
    %6 = arith.mulf %4, %5 : vector<48x512xf32>
    %cst = arith.constant 0.000000e+00 : f32
    %7 = vector.broadcast %cst : f32 to vector<48x512xf32>
    %8 = arith.addf %7, %6 : vector<48x512xf32>
    %9 = vector.extract_strided_slice %0 {offsets = [0, 1], sizes = [48, 1], strides = [1, 1]} : vector<48x2xf32> to vector<48x1xf32>
    %10 = vector.extract_strided_slice %1 {offsets = [1, 0], sizes = [1, 512], strides = [1, 1]} : vector<2x512xf32> to vector<1x512xf32>
    %11 = vector.broadcast %9 : vector<48x1xf32> to vector<48x512xf32>
    %12 = vector.broadcast %10 : vector<1x512xf32> to vector<48x512xf32>
    %13 = arith.mulf %11, %12 : vector<48x512xf32>
    %14 = arith.addf %8, %13 : vector<48x512xf32>
    %c0_3 = arith.constant 0 : index
    %c0_4 = arith.constant 0 : index
    %15 = vector.load %arg5[%c0_3, %c0_4] : memref<1x512xf32, #tpu.memory_space<vmem>>, vector<1x512xf32>
    %16 = vector.broadcast %15 : vector<1x512xf32> to vector<48x512xf32>
    %17 = arith.addf %14, %16 : vector<48x512xf32>
    %c0_5 = arith.constant 0 : index
    %c0_6 = arith.constant 0 : index
    %18 = vector.load %arg1[%c0_5, %c0_6] : memref<8x2xf32, #tpu.memory_space<vmem>>, vector<8x2xf32>
    %c0_7 = arith.constant 0 : index
    %c0_8 = arith.constant 0 : index
    %19 = vector.load %arg2[%c0_7, %c0_8] : memref<2x128xf32, #tpu.memory_space<vmem>>, vector<2x128xf32>
    %20 = vector.extract_strided_slice %18 {offsets = [0, 0], sizes = [8, 1], strides = [1, 1]} : vector<8x2xf32> to vector<8x1xf32>
    %21 = vector.extract_strided_slice %19 {offsets = [0, 0], sizes = [1, 128], strides = [1, 1]} : vector<2x128xf32> to vector<1x128xf32>
    %22 = vector.broadcast %20 : vector<8x1xf32> to vector<8x128xf32>
    %23 = vector.broadcast %21 : vector<1x128xf32> to vector<8x128xf32>
    %24 = arith.mulf %22, %23 : vector<8x128xf32>
    %cst_9 = arith.constant 0.000000e+00 : f32
    %25 = vector.broadcast %cst_9 : f32 to vector<8x128xf32>
    %26 = arith.addf %25, %24 : vector<8x128xf32>
    %27 = vector.extract_strided_slice %18 {offsets = [0, 1], sizes = [8, 1], strides = [1, 1]} : vector<8x2xf32> to vector<8x1xf32>
    %28 = vector.extract_strided_slice %19 {offsets = [1, 0], sizes = [1, 128], strides = [1, 1]} : vector<2x128xf32> to vector<1x128xf32>
    %29 = vector.broadcast %27 : vector<8x1xf32> to vector<8x128xf32>
    %30 = vector.broadcast %28 : vector<1x128xf32> to vector<8x128xf32>
    %31 = arith.mulf %29, %30 : vector<8x128xf32>
    %32 = arith.addf %26, %31 : vector<8x128xf32>
    %c0_10 = arith.constant 0 : index
    %c0_11 = arith.constant 0 : index
    %33 = vector.load %arg3[%c0_10, %c0_11] : memref<1x128xf32, #tpu.memory_space<vmem>>, vector<1x128xf32>
    %34 = vector.broadcast %33 : vector<1x128xf32> to vector<8x128xf32>
    %35 = arith.addf %32, %34 : vector<8x128xf32>
    %c0_12 = arith.constant 0 : index
    %c0_13 = arith.constant 0 : index
    %36 = vector.load %arg8[%c0_12, %c0_13] : memref<128x128xf32, #tpu.memory_space<vmem>>, vector<128x128xf32>
    %cst_14 = arith.constant dense<0.000000e+00> : vector<8x128xf32>
    %37 = tpu.matmul %35, %36, %cst_14 {dimension_numbers = #tpu.dot_dimension_numbers<[1], [0], [0], [1], [0, 0, 1, 1], [], []>} : vector<8x128xf32>, vector<128x128xf32>, vector<8x128xf32> -> vector<8x128xf32>
    %c0_15 = arith.constant 0 : index
    %c0_16 = arith.constant 0 : index
    %38 = vector.load %arg9[%c0_15, %c0_16] : memref<1x128xf32, #tpu.memory_space<vmem>>, vector<1x128xf32>
    %39 = vector.broadcast %38 : vector<1x128xf32> to vector<8x128xf32>
    %40 = arith.addf %37, %39 : vector<8x128xf32>
    %c0_17 = arith.constant 0 : index
    %c0_18 = arith.constant 0 : index
    %41 = vector.load %arg6[%c0_17, %c0_18] : memref<128x512xf32, #tpu.memory_space<vmem>>, vector<128x512xf32>
    %cst_19 = arith.constant 0.000000e+00 : f32
    %42 = vector.broadcast %cst_19 : f32 to vector<8x128xf32>
    %cst_20 = arith.constant 0.000000e+00 : f32
    %43 = vector.broadcast %cst_20 : f32 to vector<8x128xf32>
    %44 = vector.extract_strided_slice %17 {offsets = [0, 0], sizes = [8, 512], strides = [1, 1]} : vector<48x512xf32> to vector<8x512xf32>
    %cst_21 = arith.constant dense<0.000000e+00> : vector<8x512xf32>
    %45 = tpu.matmul %42, %41, %cst_21 {dimension_numbers = #tpu.dot_dimension_numbers<[1], [0], [0], [1], [0, 0, 1, 1], [], []>} : vector<8x128xf32>, vector<128x512xf32>, vector<8x512xf32> -> vector<8x512xf32>
    %46 = arith.addf %44, %45 : vector<8x512xf32>
    %47 = vector.extract_strided_slice %46 {offsets = [0, 0], sizes = [8, 128], strides = [1, 1]} : vector<8x512xf32> to vector<8x128xf32>
    %48 = arith.negf %47 : vector<8x128xf32>
    %49 = math.exp %48 : vector<8x128xf32>
    %cst_22 = arith.constant 1.000000e+00 : f32
    %50 = vector.broadcast %cst_22 : f32 to vector<8x128xf32>
    %51 = arith.addf %50, %49 : vector<8x128xf32>
    %52 = arith.divf %50, %51 : vector<8x128xf32>
    %53 = vector.extract_strided_slice %46 {offsets = [0, 128], sizes = [8, 128], strides = [1, 1]} : vector<8x512xf32> to vector<8x128xf32>
    %54 = arith.negf %53 : vector<8x128xf32>
    %55 = math.exp %54 : vector<8x128xf32>
    %cst_23 = arith.constant 1.000000e+00 : f32
    %56 = vector.broadcast %cst_23 : f32 to vector<8x128xf32>
    %57 = arith.addf %56, %55 : vector<8x128xf32>
    %58 = arith.divf %56, %57 : vector<8x128xf32>
    %59 = vector.extract_strided_slice %46 {offsets = [0, 256], sizes = [8, 128], strides = [1, 1]} : vector<8x512xf32> to vector<8x128xf32>
    %60 = math.tanh %59 : vector<8x128xf32>
    %61 = vector.extract_strided_slice %46 {offsets = [0, 384], sizes = [8, 128], strides = [1, 1]} : vector<8x512xf32> to vector<8x128xf32>
    %62 = arith.negf %61 : vector<8x128xf32>
    %63 = math.exp %62 : vector<8x128xf32>
    %cst_24 = arith.constant 1.000000e+00 : f32
    %64 = vector.broadcast %cst_24 : f32 to vector<8x128xf32>
    %65 = arith.addf %64, %63 : vector<8x128xf32>
    %66 = arith.divf %64, %65 : vector<8x128xf32>
    %67 = arith.mulf %58, %43 : vector<8x128xf32>
    %68 = arith.mulf %52, %60 : vector<8x128xf32>
    %69 = arith.addf %67, %68 : vector<8x128xf32>
    %70 = math.tanh %69 : vector<8x128xf32>
    %71 = arith.mulf %66, %70 : vector<8x128xf32>
    %72 = vector.extract_strided_slice %17 {offsets = [8, 0], sizes = [8, 512], strides = [1, 1]} : vector<48x512xf32> to vector<8x512xf32>
    %cst_25 = arith.constant dense<0.000000e+00> : vector<8x512xf32>
    %73 = tpu.matmul %71, %41, %cst_25 {dimension_numbers = #tpu.dot_dimension_numbers<[1], [0], [0], [1], [0, 0, 1, 1], [], []>} : vector<8x128xf32>, vector<128x512xf32>, vector<8x512xf32> -> vector<8x512xf32>
    %74 = arith.addf %72, %73 : vector<8x512xf32>
    %75 = vector.extract_strided_slice %74 {offsets = [0, 0], sizes = [8, 128], strides = [1, 1]} : vector<8x512xf32> to vector<8x128xf32>
    %76 = arith.negf %75 : vector<8x128xf32>
    %77 = math.exp %76 : vector<8x128xf32>
    %cst_26 = arith.constant 1.000000e+00 : f32
    %78 = vector.broadcast %cst_26 : f32 to vector<8x128xf32>
    %79 = arith.addf %78, %77 : vector<8x128xf32>
    %80 = arith.divf %78, %79 : vector<8x128xf32>
    %81 = vector.extract_strided_slice %74 {offsets = [0, 128], sizes = [8, 128], strides = [1, 1]} : vector<8x512xf32> to vector<8x128xf32>
    %82 = arith.negf %81 : vector<8x128xf32>
    %83 = math.exp %82 : vector<8x128xf32>
    %cst_27 = arith.constant 1.000000e+00 : f32
    %84 = vector.broadcast %cst_27 : f32 to vector<8x128xf32>
    %85 = arith.addf %84, %83 : vector<8x128xf32>
    %86 = arith.divf %84, %85 : vector<8x128xf32>
    %87 = vector.extract_strided_slice %74 {offsets = [0, 256], sizes = [8, 128], strides = [1, 1]} : vector<8x512xf32> to vector<8x128xf32>
    %88 = math.tanh %87 : vector<8x128xf32>
    %89 = vector.extract_strided_slice %74 {offsets = [0, 384], sizes = [8, 128], strides = [1, 1]} : vector<8x512xf32> to vector<8x128xf32>
    %90 = arith.negf %89 : vector<8x128xf32>
    %91 = math.exp %90 : vector<8x128xf32>
    %cst_28 = arith.constant 1.000000e+00 : f32
    %92 = vector.broadcast %cst_28 : f32 to vector<8x128xf32>
    %93 = arith.addf %92, %91 : vector<8x128xf32>
    %94 = arith.divf %92, %93 : vector<8x128xf32>
    %95 = arith.mulf %86, %69 : vector<8x128xf32>
    %96 = arith.mulf %80, %88 : vector<8x128xf32>
    %97 = arith.addf %95, %96 : vector<8x128xf32>
    %98 = math.tanh %97 : vector<8x128xf32>
    %99 = arith.mulf %94, %98 : vector<8x128xf32>
    %100 = vector.extract_strided_slice %17 {offsets = [16, 0], sizes = [8, 512], strides = [1, 1]} : vector<48x512xf32> to vector<8x512xf32>
    %cst_29 = arith.constant dense<0.000000e+00> : vector<8x512xf32>
    %101 = tpu.matmul %99, %41, %cst_29 {dimension_numbers = #tpu.dot_dimension_numbers<[1], [0], [0], [1], [0, 0, 1, 1], [], []>} : vector<8x128xf32>, vector<128x512xf32>, vector<8x512xf32> -> vector<8x512xf32>
    %102 = arith.addf %100, %101 : vector<8x512xf32>
    %103 = vector.extract_strided_slice %102 {offsets = [0, 0], sizes = [8, 128], strides = [1, 1]} : vector<8x512xf32> to vector<8x128xf32>
    %104 = arith.negf %103 : vector<8x128xf32>
    %105 = math.exp %104 : vector<8x128xf32>
    %cst_30 = arith.constant 1.000000e+00 : f32
    %106 = vector.broadcast %cst_30 : f32 to vector<8x128xf32>
    %107 = arith.addf %106, %105 : vector<8x128xf32>
    %108 = arith.divf %106, %107 : vector<8x128xf32>
    %109 = vector.extract_strided_slice %102 {offsets = [0, 128], sizes = [8, 128], strides = [1, 1]} : vector<8x512xf32> to vector<8x128xf32>
    %110 = arith.negf %109 : vector<8x128xf32>
    %111 = math.exp %110 : vector<8x128xf32>
    %cst_31 = arith.constant 1.000000e+00 : f32
    %112 = vector.broadcast %cst_31 : f32 to vector<8x128xf32>
    %113 = arith.addf %112, %111 : vector<8x128xf32>
    %114 = arith.divf %112, %113 : vector<8x128xf32>
    %115 = vector.extract_strided_slice %102 {offsets = [0, 256], sizes = [8, 128], strides = [1, 1]} : vector<8x512xf32> to vector<8x128xf32>
    %116 = math.tanh %115 : vector<8x128xf32>
    %117 = vector.extract_strided_slice %102 {offsets = [0, 384], sizes = [8, 128], strides = [1, 1]} : vector<8x512xf32> to vector<8x128xf32>
    %118 = arith.negf %117 : vector<8x128xf32>
    %119 = math.exp %118 : vector<8x128xf32>
    %cst_32 = arith.constant 1.000000e+00 : f32
    %120 = vector.broadcast %cst_32 : f32 to vector<8x128xf32>
    %121 = arith.addf %120, %119 : vector<8x128xf32>
    %122 = arith.divf %120, %121 : vector<8x128xf32>
    %123 = arith.mulf %114, %97 : vector<8x128xf32>
    %124 = arith.mulf %108, %116 : vector<8x128xf32>
    %125 = arith.addf %123, %124 : vector<8x128xf32>
    %126 = math.tanh %125 : vector<8x128xf32>
    %127 = arith.mulf %122, %126 : vector<8x128xf32>
    %128 = vector.extract_strided_slice %17 {offsets = [24, 0], sizes = [8, 512], strides = [1, 1]} : vector<48x512xf32> to vector<8x512xf32>
    %cst_33 = arith.constant dense<0.000000e+00> : vector<8x512xf32>
    %129 = tpu.matmul %127, %41, %cst_33 {dimension_numbers = #tpu.dot_dimension_numbers<[1], [0], [0], [1], [0, 0, 1, 1], [], []>} : vector<8x128xf32>, vector<128x512xf32>, vector<8x512xf32> -> vector<8x512xf32>
    %130 = arith.addf %128, %129 : vector<8x512xf32>
    %131 = vector.extract_strided_slice %130 {offsets = [0, 0], sizes = [8, 128], strides = [1, 1]} : vector<8x512xf32> to vector<8x128xf32>
    %132 = arith.negf %131 : vector<8x128xf32>
    %133 = math.exp %132 : vector<8x128xf32>
    %cst_34 = arith.constant 1.000000e+00 : f32
    %134 = vector.broadcast %cst_34 : f32 to vector<8x128xf32>
    %135 = arith.addf %134, %133 : vector<8x128xf32>
    %136 = arith.divf %134, %135 : vector<8x128xf32>
    %137 = vector.extract_strided_slice %130 {offsets = [0, 128], sizes = [8, 128], strides = [1, 1]} : vector<8x512xf32> to vector<8x128xf32>
    %138 = arith.negf %137 : vector<8x128xf32>
    %139 = math.exp %138 : vector<8x128xf32>
    %cst_35 = arith.constant 1.000000e+00 : f32
    %140 = vector.broadcast %cst_35 : f32 to vector<8x128xf32>
    %141 = arith.addf %140, %139 : vector<8x128xf32>
    %142 = arith.divf %140, %141 : vector<8x128xf32>
    %143 = vector.extract_strided_slice %130 {offsets = [0, 256], sizes = [8, 128], strides = [1, 1]} : vector<8x512xf32> to vector<8x128xf32>
    %144 = math.tanh %143 : vector<8x128xf32>
    %145 = vector.extract_strided_slice %130 {offsets = [0, 384], sizes = [8, 128], strides = [1, 1]} : vector<8x512xf32> to vector<8x128xf32>
    %146 = arith.negf %145 : vector<8x128xf32>
    %147 = math.exp %146 : vector<8x128xf32>
    %cst_36 = arith.constant 1.000000e+00 : f32
    %148 = vector.broadcast %cst_36 : f32 to vector<8x128xf32>
    %149 = arith.addf %148, %147 : vector<8x128xf32>
    %150 = arith.divf %148, %149 : vector<8x128xf32>
    %151 = arith.mulf %142, %125 : vector<8x128xf32>
    %152 = arith.mulf %136, %144 : vector<8x128xf32>
    %153 = arith.addf %151, %152 : vector<8x128xf32>
    %154 = math.tanh %153 : vector<8x128xf32>
    %155 = arith.mulf %150, %154 : vector<8x128xf32>
    %156 = vector.extract_strided_slice %17 {offsets = [32, 0], sizes = [8, 512], strides = [1, 1]} : vector<48x512xf32> to vector<8x512xf32>
    %cst_37 = arith.constant dense<0.000000e+00> : vector<8x512xf32>
    %157 = tpu.matmul %155, %41, %cst_37 {dimension_numbers = #tpu.dot_dimension_numbers<[1], [0], [0], [1], [0, 0, 1, 1], [], []>} : vector<8x128xf32>, vector<128x512xf32>, vector<8x512xf32> -> vector<8x512xf32>
    %158 = arith.addf %156, %157 : vector<8x512xf32>
    %159 = vector.extract_strided_slice %158 {offsets = [0, 0], sizes = [8, 128], strides = [1, 1]} : vector<8x512xf32> to vector<8x128xf32>
    %160 = arith.negf %159 : vector<8x128xf32>
    %161 = math.exp %160 : vector<8x128xf32>
    %cst_38 = arith.constant 1.000000e+00 : f32
    %162 = vector.broadcast %cst_38 : f32 to vector<8x128xf32>
    %163 = arith.addf %162, %161 : vector<8x128xf32>
    %164 = arith.divf %162, %163 : vector<8x128xf32>
    %165 = vector.extract_strided_slice %158 {offsets = [0, 128], sizes = [8, 128], strides = [1, 1]} : vector<8x512xf32> to vector<8x128xf32>
    %166 = arith.negf %165 : vector<8x128xf32>
    %167 = math.exp %166 : vector<8x128xf32>
    %cst_39 = arith.constant 1.000000e+00 : f32
    %168 = vector.broadcast %cst_39 : f32 to vector<8x128xf32>
    %169 = arith.addf %168, %167 : vector<8x128xf32>
    %170 = arith.divf %168, %169 : vector<8x128xf32>
    %171 = vector.extract_strided_slice %158 {offsets = [0, 256], sizes = [8, 128], strides = [1, 1]} : vector<8x512xf32> to vector<8x128xf32>
    %172 = math.tanh %171 : vector<8x128xf32>
    %173 = vector.extract_strided_slice %158 {offsets = [0, 384], sizes = [8, 128], strides = [1, 1]} : vector<8x512xf32> to vector<8x128xf32>
    %174 = arith.negf %173 : vector<8x128xf32>
    %175 = math.exp %174 : vector<8x128xf32>
    %cst_40 = arith.constant 1.000000e+00 : f32
    %176 = vector.broadcast %cst_40 : f32 to vector<8x128xf32>
    %177 = arith.addf %176, %175 : vector<8x128xf32>
    %178 = arith.divf %176, %177 : vector<8x128xf32>
    %179 = arith.mulf %170, %153 : vector<8x128xf32>
    %180 = arith.mulf %164, %172 : vector<8x128xf32>
    %181 = arith.addf %179, %180 : vector<8x128xf32>
    %182 = math.tanh %181 : vector<8x128xf32>
    %183 = arith.mulf %178, %182 : vector<8x128xf32>
    %184 = vector.extract_strided_slice %17 {offsets = [40, 0], sizes = [8, 512], strides = [1, 1]} : vector<48x512xf32> to vector<8x512xf32>
    %cst_41 = arith.constant dense<0.000000e+00> : vector<8x512xf32>
    %185 = tpu.matmul %183, %41, %cst_41 {dimension_numbers = #tpu.dot_dimension_numbers<[1], [0], [0], [1], [0, 0, 1, 1], [], []>} : vector<8x128xf32>, vector<128x512xf32>, vector<8x512xf32> -> vector<8x512xf32>
    %186 = arith.addf %184, %185 : vector<8x512xf32>
    %187 = vector.extract_strided_slice %186 {offsets = [0, 0], sizes = [8, 128], strides = [1, 1]} : vector<8x512xf32> to vector<8x128xf32>
    %188 = arith.negf %187 : vector<8x128xf32>
    %189 = math.exp %188 : vector<8x128xf32>
    %cst_42 = arith.constant 1.000000e+00 : f32
    %190 = vector.broadcast %cst_42 : f32 to vector<8x128xf32>
    %191 = arith.addf %190, %189 : vector<8x128xf32>
    %192 = arith.divf %190, %191 : vector<8x128xf32>
    %193 = vector.extract_strided_slice %186 {offsets = [0, 128], sizes = [8, 128], strides = [1, 1]} : vector<8x512xf32> to vector<8x128xf32>
    %194 = arith.negf %193 : vector<8x128xf32>
    %195 = math.exp %194 : vector<8x128xf32>
    %cst_43 = arith.constant 1.000000e+00 : f32
    %196 = vector.broadcast %cst_43 : f32 to vector<8x128xf32>
    %197 = arith.addf %196, %195 : vector<8x128xf32>
    %198 = arith.divf %196, %197 : vector<8x128xf32>
    %199 = vector.extract_strided_slice %186 {offsets = [0, 256], sizes = [8, 128], strides = [1, 1]} : vector<8x512xf32> to vector<8x128xf32>
    %200 = math.tanh %199 : vector<8x128xf32>
    %201 = vector.extract_strided_slice %186 {offsets = [0, 384], sizes = [8, 128], strides = [1, 1]} : vector<8x512xf32> to vector<8x128xf32>
    %202 = arith.negf %201 : vector<8x128xf32>
    %203 = math.exp %202 : vector<8x128xf32>
    %cst_44 = arith.constant 1.000000e+00 : f32
    %204 = vector.broadcast %cst_44 : f32 to vector<8x128xf32>
    %205 = arith.addf %204, %203 : vector<8x128xf32>
    %206 = arith.divf %204, %205 : vector<8x128xf32>
    %207 = arith.mulf %198, %181 : vector<8x128xf32>
    %208 = arith.mulf %192, %200 : vector<8x128xf32>
    %209 = arith.addf %207, %208 : vector<8x128xf32>
    %210 = math.tanh %209 : vector<8x128xf32>
    %211 = arith.mulf %206, %210 : vector<8x128xf32>
    %212 = tpu.concatenate %71, %99, %127, %155, %183, %211 in 0 : vector<8x128xf32>, vector<8x128xf32>, vector<8x128xf32>, vector<8x128xf32>, vector<8x128xf32>, vector<8x128xf32> -> vector<48x128xf32>
    %c0_45 = arith.constant 0 : index
    %c0_46 = arith.constant 0 : index
    %213 = vector.load %arg7[%c0_45, %c0_46] : memref<128x128xf32, #tpu.memory_space<vmem>>, vector<128x128xf32>
    %cst_47 = arith.constant dense<0.000000e+00> : vector<48x128xf32>
    %214 = tpu.matmul %212, %213, %cst_47 {dimension_numbers = #tpu.dot_dimension_numbers<[1], [0], [0], [1], [0, 0, 1, 1], [], []>} : vector<48x128xf32>, vector<128x128xf32>, vector<48x128xf32> -> vector<48x128xf32>
    %215 = vector.shape_cast %214 : vector<48x128xf32> to vector<6x8x128xf32>
    %216 = vector.shape_cast %40 : vector<8x128xf32> to vector<1x8x128xf32>
    %217 = vector.broadcast %216 : vector<1x8x128xf32> to vector<6x8x128xf32>
    %218 = arith.addf %215, %217 : vector<6x8x128xf32>
    %219 = vector.shape_cast %218 : vector<6x8x128xf32> to vector<48x128xf32>
    %cst_48 = arith.constant 0.000000e+00 : f32
    %220 = vector.broadcast %cst_48 : f32 to vector<48x128xf32>
    %221 = arith.maximumf %219, %220 : vector<48x128xf32>
    %c0_49 = arith.constant 0 : index
    %c0_50 = arith.constant 0 : index
    %222 = vector.load %arg10[%c0_49, %c0_50] : memref<128x128xf32, #tpu.memory_space<vmem>>, vector<128x128xf32>
    %cst_51 = arith.constant dense<0.000000e+00> : vector<48x128xf32>
    %223 = tpu.matmul %221, %222, %cst_51 {dimension_numbers = #tpu.dot_dimension_numbers<[1], [0], [0], [1], [0, 0, 1, 1], [], []>} : vector<48x128xf32>, vector<128x128xf32>, vector<48x128xf32> -> vector<48x128xf32>
    %c0_52 = arith.constant 0 : index
    %c0_53 = arith.constant 0 : index
    %224 = vector.load %arg11[%c0_52, %c0_53] : memref<1x128xf32, #tpu.memory_space<vmem>>, vector<1x128xf32>
    %225 = vector.broadcast %224 : vector<1x128xf32> to vector<48x128xf32>
    %226 = arith.addf %223, %225 : vector<48x128xf32>
    %227 = vector.extract_strided_slice %221 {offsets = [0, 0], sizes = [8, 128], strides = [1, 1]} : vector<48x128xf32> to vector<8x128xf32>
    %c0_54 = arith.constant 0 : index
    %c0_55 = arith.constant 0 : index
    %228 = vector.load %arg13[%c0_54, %c0_55] : memref<8x768xf32, #tpu.memory_space<vmem>>, vector<8x128xf32>
    tpu.vector_store %arg13[%c0_54, %c0_55], %227 {strides = array<i32>} : memref<8x768xf32, #tpu.memory_space<vmem>>, vector<8x128xf32>,
    %229 = vector.extract_strided_slice %226 {offsets = [0, 0], sizes = [8, 128], strides = [1, 1]} : vector<48x128xf32> to vector<8x128xf32>
    %c0_56 = arith.constant 0 : index
    %c0_57 = arith.constant 0 : index
    %230 = vector.load %arg12[%c0_56, %c0_57] : memref<8x768xf32, #tpu.memory_space<vmem>>, vector<8x128xf32>
    tpu.vector_store %arg12[%c0_56, %c0_57], %229 {strides = array<i32>} : memref<8x768xf32, #tpu.memory_space<vmem>>, vector<8x128xf32>,
    %231 = vector.extract_strided_slice %221 {offsets = [8, 0], sizes = [8, 128], strides = [1, 1]} : vector<48x128xf32> to vector<8x128xf32>
    %c0_58 = arith.constant 0 : index
    %c128 = arith.constant 128 : index
    %232 = vector.load %arg13[%c0_58, %c128] : memref<8x768xf32, #tpu.memory_space<vmem>>, vector<8x128xf32>
    tpu.vector_store %arg13[%c0_58, %c128], %231 {strides = array<i32>} : memref<8x768xf32, #tpu.memory_space<vmem>>, vector<8x128xf32>,
    %233 = vector.extract_strided_slice %226 {offsets = [8, 0], sizes = [8, 128], strides = [1, 1]} : vector<48x128xf32> to vector<8x128xf32>
    %c0_59 = arith.constant 0 : index
    %c128_60 = arith.constant 128 : index
    %234 = vector.load %arg12[%c0_59, %c128_60] : memref<8x768xf32, #tpu.memory_space<vmem>>, vector<8x128xf32>
    tpu.vector_store %arg12[%c0_59, %c128_60], %233 {strides = array<i32>} : memref<8x768xf32, #tpu.memory_space<vmem>>, vector<8x128xf32>,
    %235 = vector.extract_strided_slice %221 {offsets = [16, 0], sizes = [8, 128], strides = [1, 1]} : vector<48x128xf32> to vector<8x128xf32>
    %c0_61 = arith.constant 0 : index
    %c256 = arith.constant 256 : index
    %236 = vector.load %arg13[%c0_61, %c256] : memref<8x768xf32, #tpu.memory_space<vmem>>, vector<8x128xf32>
    tpu.vector_store %arg13[%c0_61, %c256], %235 {strides = array<i32>} : memref<8x768xf32, #tpu.memory_space<vmem>>, vector<8x128xf32>,
    %237 = vector.extract_strided_slice %226 {offsets = [16, 0], sizes = [8, 128], strides = [1, 1]} : vector<48x128xf32> to vector<8x128xf32>
    %c0_62 = arith.constant 0 : index
    %c256_63 = arith.constant 256 : index
    %238 = vector.load %arg12[%c0_62, %c256_63] : memref<8x768xf32, #tpu.memory_space<vmem>>, vector<8x128xf32>
    tpu.vector_store %arg12[%c0_62, %c256_63], %237 {strides = array<i32>} : memref<8x768xf32, #tpu.memory_space<vmem>>, vector<8x128xf32>,
    %239 = vector.extract_strided_slice %221 {offsets = [24, 0], sizes = [8, 128], strides = [1, 1]} : vector<48x128xf32> to vector<8x128xf32>
    %c0_64 = arith.constant 0 : index
    %c384 = arith.constant 384 : index
    %240 = vector.load %arg13[%c0_64, %c384] : memref<8x768xf32, #tpu.memory_space<vmem>>, vector<8x128xf32>
    tpu.vector_store %arg13[%c0_64, %c384], %239 {strides = array<i32>} : memref<8x768xf32, #tpu.memory_space<vmem>>, vector<8x128xf32>,
    %241 = vector.extract_strided_slice %226 {offsets = [24, 0], sizes = [8, 128], strides = [1, 1]} : vector<48x128xf32> to vector<8x128xf32>
    %c0_65 = arith.constant 0 : index
    %c384_66 = arith.constant 384 : index
    %242 = vector.load %arg12[%c0_65, %c384_66] : memref<8x768xf32, #tpu.memory_space<vmem>>, vector<8x128xf32>
    tpu.vector_store %arg12[%c0_65, %c384_66], %241 {strides = array<i32>} : memref<8x768xf32, #tpu.memory_space<vmem>>, vector<8x128xf32>,
    %243 = vector.extract_strided_slice %221 {offsets = [32, 0], sizes = [8, 128], strides = [1, 1]} : vector<48x128xf32> to vector<8x128xf32>
    %c0_67 = arith.constant 0 : index
    %c512 = arith.constant 512 : index
    %244 = vector.load %arg13[%c0_67, %c512] : memref<8x768xf32, #tpu.memory_space<vmem>>, vector<8x128xf32>
    tpu.vector_store %arg13[%c0_67, %c512], %243 {strides = array<i32>} : memref<8x768xf32, #tpu.memory_space<vmem>>, vector<8x128xf32>,
    %245 = vector.extract_strided_slice %226 {offsets = [32, 0], sizes = [8, 128], strides = [1, 1]} : vector<48x128xf32> to vector<8x128xf32>
    %c0_68 = arith.constant 0 : index
    %c512_69 = arith.constant 512 : index
    %246 = vector.load %arg12[%c0_68, %c512_69] : memref<8x768xf32, #tpu.memory_space<vmem>>, vector<8x128xf32>
    tpu.vector_store %arg12[%c0_68, %c512_69], %245 {strides = array<i32>} : memref<8x768xf32, #tpu.memory_space<vmem>>, vector<8x128xf32>,
    %247 = vector.extract_strided_slice %221 {offsets = [40, 0], sizes = [8, 128], strides = [1, 1]} : vector<48x128xf32> to vector<8x128xf32>
    %c0_70 = arith.constant 0 : index
    %c640 = arith.constant 640 : index
    %248 = vector.load %arg13[%c0_70, %c640] : memref<8x768xf32, #tpu.memory_space<vmem>>, vector<8x128xf32>
    tpu.vector_store %arg13[%c0_70, %c640], %247 {strides = array<i32>} : memref<8x768xf32, #tpu.memory_space<vmem>>, vector<8x128xf32>,
    %249 = vector.extract_strided_slice %226 {offsets = [40, 0], sizes = [8, 128], strides = [1, 1]} : vector<48x128xf32> to vector<8x128xf32>
    %c0_71 = arith.constant 0 : index
    %c640_72 = arith.constant 640 : index
    %250 = vector.load %arg12[%c0_71, %c640_72] : memref<8x768xf32, #tpu.memory_space<vmem>>, vector<8x128xf32>
    tpu.vector_store %arg12[%c0_71, %c640_72], %249 {strides = array<i32>} : memref<8x768xf32, #tpu.memory_space<vmem>>, vector<8x128xf32>,
    return
  }
}

</mosaic_0001>

<llo_original>
// kernel: motion_lstm.1
$region0: #{motion_lstm.1}
  #allocation0 [shape = 'u32[]', space=smem, size = 0x4, offset = 0x4, fixed_abs, tag = 'smem constant byte address 0x4 - core index']
  #allocation1 [shape = 'u32[144,128]{1,0:T(1,128)}', space=vmem, size = 0x12000, scoped, tag = 'internal scratch']
  %s0 = inlined_call_operand.vmem [shape: f32[48,2], index: 0, kind: input, shape index: {}]
  %s1 = inlined_call_operand.vmem [shape: f32[8,2], index: 1, kind: input, shape index: {}]
  %s2 = inlined_call_operand.vmem [shape: f32[2,128], index: 2, kind: input, shape index: {}]
  %s3 = inlined_call_operand.hbm [shape: f32[1,128], index: 3, kind: input, shape index: {}]
  %s4 = inlined_call_operand.vmem [shape: f32[2,512], index: 4, kind: input, shape index: {}]
  %s5 = inlined_call_operand.hbm [shape: f32[1,512], index: 5, kind: input, shape index: {}]
  %s6 = inlined_call_operand.hbm [shape: f32[128,512], index: 6, kind: input, shape index: {}]
  %s7 = inlined_call_operand.hbm [shape: f32[128,128], index: 7, kind: input, shape index: {}]
  %s8 = inlined_call_operand.hbm [shape: f32[128,128], index: 8, kind: input, shape index: {}]
  %s9 = inlined_call_operand.hbm [shape: f32[1,128], index: 9, kind: input, shape index: {}]
  %s10 = inlined_call_operand.vmem [shape: f32[128,128], index: 10, kind: input, shape index: {}]
  %s11 = inlined_call_operand.hbm [shape: f32[1,128], index: 11, kind: input, shape index: {}]
  %s12 = inlined_call_operand.vmem [shape: f32[8,768], index: 12, kind: output, shape index: {0}]
  %s13 = inlined_call_operand.vmem [shape: f32[8,768], index: 13, kind: output, shape index: {1}]
  %14 = xla_tuple %s12, %s13
  %s15 = sld [smem:[#allocation0]]
  $region94: #{motion_lstm.1} parent=0
    _
  %s17 = ssub.s32 1, %s15
  %s18 = scalar_select 0, %s17, %s15
  $region1: #{motion_lstm.1} parent=0
    #allocation2 [shape = 'u8[512]{0}', space=vmem, size = 0x400, scoped, tag = 'input window, operand 3, single buffered']
    #allocation3 [shape = 's32[1]{0}', space=sflag, size = 0x4, scoped, tag = 'scoped memory for motion_lstm.1']
    #allocation4 [shape = 'u8[2048]{0}', space=vmem, size = 0x800, scoped, tag = 'input window, operand 5, single buffered']
    #allocation5 [shape = 's32[1]{0}', space=sflag, size = 0x4, scoped, tag = 'scoped memory for motion_lstm.1']
    #allocation6 [shape = 'u8[262144]{0}', space=vmem, size = 0x40000, scoped, tag = 'input window, operand 6, single buffered']
    #allocation7 [shape = 'u8[65536]{0}', space=vmem, size = 0x10000, scoped, tag = 'input window, operand 7, single buffered']
    #allocation8 [shape = 's32[1]{0}', space=sflag, size = 0x4, scoped, tag = 'scoped memory for motion_lstm.1']
    #allocation9 [shape = 'u8[65536]{0}', space=vmem, size = 0x10000, scoped, tag = 'input window, operand 8, single buffered']
    #allocation10 [shape = 'u8[512]{0}', space=vmem, size = 0x400, scoped, tag = 'input window, operand 9, single buffered']
    #allocation11 [shape = 's32[1]{0}', space=sflag, size = 0x4, scoped, tag = 'scoped memory for motion_lstm.1']
    #allocation12 [shape = 'u8[512]{0}', space=vmem, size = 0x400, scoped, tag = 'input window, operand 11, single buffered']
    %19 = vsyncpa [#allocation3], 0
    %20 = vsyncpa [#allocation5], 0
    %21 = vsyncpa [#allocation8], 0
    %22 = vsyncpa [#allocation11], 0
    // Predicated region
    $region2: #{motion_lstm.1} parent=1 // pred_check
      _
    $region3: #{motion_lstm.1} parent=1 // pred_check_branch
      %24 = sbr.rel (0) target = $region5
    $region4: #{motion_lstm.1} parent=1 // pred_region
      _
    $region5: #{motion_lstm.1} parent=1 // pred_fallthru
      _
    // Predicated region
    $region6: #{motion_lstm.1} parent=1 // pred_check
      _
    $region7: #{motion_lstm.1} parent=1 // pred_check_branch
      %26 = sbr.rel (0) target = $region9
    $region8: #{motion_lstm.1} parent=1 // pred_region
      _
    $region9: #{motion_lstm.1} parent=1 // pred_fallthru
      _
    // Predicated region
    $region10: #{motion_lstm.1} parent=1 // pred_check
      _
    $region11: #{motion_lstm.1} parent=1 // pred_check_branch
      %28 = sbr.rel (0) target = $region13
    $region12: #{motion_lstm.1} parent=1 // pred_region
      _
    $region13: #{motion_lstm.1} parent=1 // pred_fallthru
      _
    // Predicated region
    $region14: #{motion_lstm.1} parent=1 // pred_check
      _
    $region15: #{motion_lstm.1} parent=1 // pred_check_branch
      %30 = sbr.rel (0) target = $region17
    $region16: #{motion_lstm.1} parent=1 // pred_region
      %s32 = ssub.s32 16, 16
      %33 = vsyncadd [#allocation3], %s32
      %s35 = sshll.u32 [#allocation2], 4
      %s36 = int_to_ptr.vmem [resolvable:$true] %s35
      %38 = dma.hbm_to_vmem [thread:$0]  %s3, 16, %s36, [#allocation3]
    $region17: #{motion_lstm.1} parent=1 // pred_fallthru
      _
    // Predicated region
    $region18: #{motion_lstm.1} parent=1 // pred_check
      _
    $region19: #{motion_lstm.1} parent=1 // pred_check_branch
      %40 = sbr.rel (0) target = $region21
    $region20: #{motion_lstm.1} parent=1 // pred_region
      _
    $region21: #{motion_lstm.1} parent=1 // pred_fallthru
      _
    // Predicated region
    $region22: #{motion_lstm.1} parent=1 // pred_check
      _
    $region23: #{motion_lstm.1} parent=1 // pred_check_branch
      %42 = sbr.rel (0) target = $region25
    $region24: #{motion_lstm.1} parent=1 // pred_region
      %s44 = ssub.s32 64, 64
      %45 = vsyncadd [#allocation5], %s44
      %s47 = sshll.u32 [#allocation4], 4
      %s48 = int_to_ptr.vmem [resolvable:$true] %s47
      %50 = dma.hbm_to_vmem [thread:$0]  %s5, 64, %s48, [#allocation5]
    $region25: #{motion_lstm.1} parent=1 // pred_fallthru
      _
    // Predicated region
    $region26: #{motion_lstm.1} parent=1 // pred_check
      _
    $region27: #{motion_lstm.1} parent=1 // pred_check_branch
      %52 = sbr.rel (0) target = $region29
    $region28: #{motion_lstm.1} parent=1 // pred_region
      %s54 = ssub.s32 8192, 8192
      %55 = vsyncadd [#allocation5], %s54
      %s56 = sshll.u32 [#allocation6], 4
      %s57 = int_to_ptr.vmem [resolvable:$true] %s56
      %62 = dma.hbm_to_vmem [thread:$0]  %s6, 8192, %s57, [#allocation5], 512, 512, 32
    $region29: #{motion_lstm.1} parent=1 // pred_fallthru
      _
    // Predicated region
    $region30: #{motion_lstm.1} parent=1 // pred_check
      _
    $region31: #{motion_lstm.1} parent=1 // pred_check_branch
      %64 = sbr.rel (0) target = $region33
    $region32: #{motion_lstm.1} parent=1 // pred_region
      %s66 = ssub.s32 2048, 2048
      %67 = vsyncadd [#allocation8], %s66
      %s68 = sshll.u32 [#allocation7], 4
      %s69 = int_to_ptr.vmem [resolvable:$true] %s68
      %74 = dma.hbm_to_vmem [thread:$0]  %s7, 2048, %s69, [#allocation8], 128, 128, 8
    $region33: #{motion_lstm.1} parent=1 // pred_fallthru
      _
    // Predicated region
    $region34: #{motion_lstm.1} parent=1 // pred_check
      _
    $region35: #{motion_lstm.1} parent=1 // pred_check_branch
      %76 = sbr.rel (0) target = $region37
    $region36: #{motion_lstm.1} parent=1 // pred_region
      %s78 = ssub.s32 2048, 2048
      %79 = vsyncadd [#allocation8], %s78
      %s80 = sshll.u32 [#allocation9], 4
      %s81 = int_to_ptr.vmem [resolvable:$true] %s80
      %86 = dma.hbm_to_vmem [thread:$0]  %s8, 2048, %s81, [#allocation8], 128, 128, 8
    $region37: #{motion_lstm.1} parent=1 // pred_fallthru
      _
    // Predicated region
    $region38: #{motion_lstm.1} parent=1 // pred_check
      _
    $region39: #{motion_lstm.1} parent=1 // pred_check_branch
      %88 = sbr.rel (0) target = $region41
    $region40: #{motion_lstm.1} parent=1 // pred_region
      %s90 = ssub.s32 16, 16
      %91 = vsyncadd [#allocation11], %s90
      %s93 = sshll.u32 [#allocation10], 4
      %s94 = int_to_ptr.vmem [resolvable:$true] %s93
      %96 = dma.hbm_to_vmem [thread:$0]  %s9, 16, %s94, [#allocation11]
    $region41: #{motion_lstm.1} parent=1 // pred_fallthru
      _
    // Predicated region
    $region42: #{motion_lstm.1} parent=1 // pred_check
      _
    $region43: #{motion_lstm.1} parent=1 // pred_check_branch
      %98 = sbr.rel (0) target = $region45
    $region44: #{motion_lstm.1} parent=1 // pred_region
      _
    $region45: #{motion_lstm.1} parent=1 // pred_fallthru
      _
    // Predicated region
    $region46: #{motion_lstm.1} parent=1 // pred_check
      _
    $region47: #{motion_lstm.1} parent=1 // pred_check_branch
      %100 = sbr.rel (0) target = $region49
    $region48: #{motion_lstm.1} parent=1 // pred_region
      %s102 = ssub.s32 16, 16
      %103 = vsyncadd [#allocation11], %s102
      %s105 = sshll.u32 [#allocation12], 4
      %s106 = int_to_ptr.vmem [resolvable:$true] %s105
      %108 = dma.hbm_to_vmem [thread:$0]  %s11, 16, %s106, [#allocation11]
    $region49: #{motion_lstm.1} parent=1 // pred_fallthru
      _
    // Predicated region
    $region50: #{motion_lstm.1} parent=1 // pred_check
      _
    $region51: #{motion_lstm.1} parent=1 // pred_check_branch
      %110 = sbr.rel (0) target = $region53
    $region52: #{motion_lstm.1} parent=1 // pred_region
      %111 = dma.done [#allocation3], 16
    $region53: #{motion_lstm.1} parent=1 // pred_fallthru
      _
    // Predicated region
    $region54: #{motion_lstm.1} parent=1 // pred_check
      _
    $region55: #{motion_lstm.1} parent=1 // pred_check_branch
      %113 = sbr.rel (0) target = $region57
    $region56: #{motion_lstm.1} parent=1 // pred_region
      %114 = dma.done [#allocation5], 64
    $region57: #{motion_lstm.1} parent=1 // pred_fallthru
      _
    // Predicated region
    $region58: #{motion_lstm.1} parent=1 // pred_check
      _
    $region59: #{motion_lstm.1} parent=1 // pred_check_branch
      %116 = sbr.rel (0) target = $region61
    $region60: #{motion_lstm.1} parent=1 // pred_region
      %117 = dma.done [#allocation5], 8192
    $region61: #{motion_lstm.1} parent=1 // pred_fallthru
      _
    // Predicated region
    $region62: #{motion_lstm.1} parent=1 // pred_check
      _
    $region63: #{motion_lstm.1} parent=1 // pred_check_branch
      %119 = sbr.rel (0) target = $region65
    $region64: #{motion_lstm.1} parent=1 // pred_region
      %120 = dma.done [#allocation8], 2048
    $region65: #{motion_lstm.1} parent=1 // pred_fallthru
      _
    // Predicated region
    $region66: #{motion_lstm.1} parent=1 // pred_check
      _
    $region67: #{motion_lstm.1} parent=1 // pred_check_branch
      %122 = sbr.rel (0) target = $region69
    $region68: #{motion_lstm.1} parent=1 // pred_region
      %123 = dma.done [#allocation8], 2048
    $region69: #{motion_lstm.1} parent=1 // pred_fallthru
      _
    // Predicated region
    $region70: #{motion_lstm.1} parent=1 // pred_check
      _
    $region71: #{motion_lstm.1} parent=1 // pred_check_branch
      %125 = sbr.rel (0) target = $region73
    $region72: #{motion_lstm.1} parent=1 // pred_region
      %126 = dma.done [#allocation11], 16
    $region73: #{motion_lstm.1} parent=1 // pred_fallthru
      _
    // Predicated region
    $region74: #{motion_lstm.1} parent=1 // pred_check
      _
    $region75: #{motion_lstm.1} parent=1 // pred_check_branch
      %128 = sbr.rel (0) target = $region77
    $region76: #{motion_lstm.1} parent=1 // pred_region
      %129 = dma.done [#allocation11], 16
    $region77: #{motion_lstm.1} parent=1 // pred_fallthru
      _
    %v130 = vld [vmem:[%s0] sm:$0xff]
    %v131 = vld [vmem:[%s0 + $0x8] sm:$0xff]
    %v132 = vld [vmem:[%s0 + $0x10] sm:$0xff]
    %v133 = vld [vmem:[%s0 + $0x18] sm:$0xff]
    %v134 = vld [vmem:[%s0 + $0x20] sm:$0xff]
    %v135 = vld [vmem:[%s0 + $0x28] sm:$0xff]
    %v136 = vld [vmem:[%s4] sm:$0xff]
    %138 = vset.pattern.permute.xlu0 0
    %139 = vperm.xlu0 %138, %v130
    %v140 = vpop.permute.xlu0 %139
    %143 = vset.pattern.permute.xlu0 0
    %144 = vperm.xlu0 %143, %v131
    %v145 = vpop.permute.xlu0 %144
    %148 = vset.pattern.permute.xlu0 0
    %149 = vperm.xlu0 %148, %v132
    %v150 = vpop.permute.xlu0 %149
    %153 = vset.pattern.permute.xlu0 0
    %154 = vperm.xlu0 %153, %v133
    %v155 = vpop.permute.xlu0 %154
    %158 = vset.pattern.permute.xlu0 0
    %159 = vperm.xlu0 %158, %v134
    %v160 = vpop.permute.xlu0 %159
    %163 = vset.pattern.permute.xlu0 0
    %164 = vperm.xlu0 %163, %v135
    %v165 = vpop.permute.xlu0 %164
    %v168 = vlaneseq
    %v169 = vshrl.u32 %v168, 7
    %v170 = vsub.s32 0, %v169
    %v171 = vrot.slane %v136, %v170
    %v172 = vlaneseq
    %v173 = vshrl.u32 %v172, 7
    %v174 = vsub.s32 2, %v173
    %v175 = vrot.slane %v136, %v174
    %v176 = vlaneseq
    %v177 = vshrl.u32 %v176, 7
    %v178 = vsub.s32 4, %v177
    %v179 = vrot.slane %v136, %v178
    %v180 = vlaneseq
    %v181 = vshrl.u32 %v180, 7
    %v182 = vsub.s32 6, %v181
    %v183 = vrot.slane %v136, %v182
    %v188 = vlaneseq
    %v189 = vshrl.u32 %v188, 7
    %v190 = vsub.s32 0, %v189
    %v191 = vrot.slane %v171, %v190
    %v192 = vlaneseq
    %v193 = vshrl.u32 %v192, 7
    %v194 = vsub.s32 0, %v193
    %v195 = vrot.slane %v175, %v194
    %v196 = vlaneseq
    %v197 = vshrl.u32 %v196, 7
    %v198 = vsub.s32 0, %v197
    %v199 = vrot.slane %v179, %v198
    %v200 = vlaneseq
    %v201 = vshrl.u32 %v200, 7
    %v202 = vsub.s32 0, %v201
    %v203 = vrot.slane %v183, %v202
    %v204 = vmul.f32 %v140, %v191
    %v205 = vmul.f32 %v140, %v195
    %v206 = vmul.f32 %v140, %v199
    %v207 = vmul.f32 %v140, %v203
    %v208 = vmul.f32 %v145, %v191
    %v209 = vmul.f32 %v145, %v195
    %v210 = vmul.f32 %v145, %v199
    %v211 = vmul.f32 %v145, %v203
    %v212 = vmul.f32 %v150, %v191
    %v213 = vmul.f32 %v150, %v195
    %v214 = vmul.f32 %v150, %v199
    %v215 = vmul.f32 %v150, %v203
    %v216 = vmul.f32 %v155, %v191
    %v217 = vmul.f32 %v155, %v195
    %v218 = vmul.f32 %v155, %v199
    %v219 = vmul.f32 %v155, %v203
    %v220 = vmul.f32 %v160, %v191
    %v221 = vmul.f32 %v160, %v195
    %v222 = vmul.f32 %v160, %v199
    %v223 = vmul.f32 %v160, %v203
    %v224 = vmul.f32 %v165, %v191
    %v225 = vmul.f32 %v165, %v195
    %v226 = vmul.f32 %v165, %v199
    %v227 = vmul.f32 %v165, %v203
    %v228 = vadd.f32 %v204, 0.0
    %v229 = vadd.f32 %v205, 0.0
    %v230 = vadd.f32 %v206, 0.0
    %v231 = vadd.f32 %v207, 0.0
    %v232 = vadd.f32 %v208, 0.0
    %v233 = vadd.f32 %v209, 0.0
    %v234 = vadd.f32 %v210, 0.0
    %v235 = vadd.f32 %v211, 0.0
    %v236 = vadd.f32 %v212, 0.0
    %v237 = vadd.f32 %v213, 0.0
    %v238 = vadd.f32 %v214, 0.0
    %v239 = vadd.f32 %v215, 0.0
    %v240 = vadd.f32 %v216, 0.0
    %v241 = vadd.f32 %v217, 0.0
    %v242 = vadd.f32 %v218, 0.0
    %v243 = vadd.f32 %v219, 0.0
    %v244 = vadd.f32 %v220, 0.0
    %v245 = vadd.f32 %v221, 0.0
    %v246 = vadd.f32 %v222, 0.0
    %v247 = vadd.f32 %v223, 0.0
    %v248 = vadd.f32 %v224, 0.0
    %v249 = vadd.f32 %v225, 0.0
    %v250 = vadd.f32 %v226, 0.0
    %v251 = vadd.f32 %v227, 0.0
    %252 = vset.pattern.permute.xlu0 1
    %253 = vperm.xlu0 %252, %v130
    %v254 = vpop.permute.xlu0 %253
    %256 = vset.pattern.permute.xlu0 1
    %257 = vperm.xlu0 %256, %v131
    %v258 = vpop.permute.xlu0 %257
    %260 = vset.pattern.permute.xlu0 1
    %261 = vperm.xlu0 %260, %v132
    %v262 = vpop.permute.xlu0 %261
    %264 = vset.pattern.permute.xlu0 1
    %265 = vperm.xlu0 %264, %v133
    %v266 = vpop.permute.xlu0 %265
    %268 = vset.pattern.permute.xlu0 1
    %269 = vperm.xlu0 %268, %v134
    %v270 = vpop.permute.xlu0 %269
    %272 = vset.pattern.permute.xlu0 1
    %273 = vperm.xlu0 %272, %v135
    %v274 = vpop.permute.xlu0 %273
    %v276 = vlaneseq
    %v277 = vshrl.u32 %v276, 7
    %v278 = vsub.s32 1, %v277
    %v279 = vrot.slane %v136, %v278
    %v280 = vlaneseq
    %v281 = vshrl.u32 %v280, 7
    %v282 = vsub.s32 3, %v281
    %v283 = vrot.slane %v136, %v282
    %v284 = vlaneseq
    %v285 = vshrl.u32 %v284, 7
    %v286 = vsub.s32 5, %v285
    %v287 = vrot.slane %v136, %v286
    %v288 = vlaneseq
    %v289 = vshrl.u32 %v288, 7
    %v290 = vsub.s32 7, %v289
    %v291 = vrot.slane %v136, %v290
    %v296 = vlaneseq
    %v297 = vshrl.u32 %v296, 7
    %v298 = vsub.s32 1, %v297
    %v299 = vrot.slane %v279, %v298
    %v300 = vlaneseq
    %v301 = vshrl.u32 %v300, 7
    %v302 = vsub.s32 1, %v301
    %v303 = vrot.slane %v283, %v302
    %v304 = vlaneseq
    %v305 = vshrl.u32 %v304, 7
    %v306 = vsub.s32 1, %v305
    %v307 = vrot.slane %v287, %v306
    %v308 = vlaneseq
    %v309 = vshrl.u32 %v308, 7
    %v310 = vsub.s32 1, %v309
    %v311 = vrot.slane %v291, %v310
    %v312 = vmul.f32 %v254, %v299
    %v313 = vmul.f32 %v254, %v303
    %v314 = vmul.f32 %v254, %v307
    %v315 = vmul.f32 %v254, %v311
    %v316 = vmul.f32 %v258, %v299
    %v317 = vmul.f32 %v258, %v303
    %v318 = vmul.f32 %v258, %v307
    %v319 = vmul.f32 %v258, %v311
    %v320 = vmul.f32 %v262, %v299
    %v321 = vmul.f32 %v262, %v303
    %v322 = vmul.f32 %v262, %v307
    %v323 = vmul.f32 %v262, %v311
    %v324 = vmul.f32 %v266, %v299
    %v325 = vmul.f32 %v266, %v303
    %v326 = vmul.f32 %v266, %v307
    %v327 = vmul.f32 %v266, %v311
    %v328 = vmul.f32 %v270, %v299
    %v329 = vmul.f32 %v270, %v303
    %v330 = vmul.f32 %v270, %v307
    %v331 = vmul.f32 %v270, %v311
    %v332 = vmul.f32 %v274, %v299
    %v333 = vmul.f32 %v274, %v303
    %v334 = vmul.f32 %v274, %v307
    %v335 = vmul.f32 %v274, %v311
    %v336 = vadd.f32 %v228, %v312
    %v337 = vadd.f32 %v229, %v313
    %v338 = vadd.f32 %v230, %v314
    %v339 = vadd.f32 %v231, %v315
    %v340 = vadd.f32 %v232, %v316
    %v341 = vadd.f32 %v233, %v317
    %v342 = vadd.f32 %v234, %v318
    %v343 = vadd.f32 %v235, %v319
    %v344 = vadd.f32 %v236, %v320
    %v345 = vadd.f32 %v237, %v321
    %v346 = vadd.f32 %v238, %v322
    %v347 = vadd.f32 %v239, %v323
    %v348 = vadd.f32 %v240, %v324
    %v349 = vadd.f32 %v241, %v325
    %v350 = vadd.f32 %v242, %v326
    %v351 = vadd.f32 %v243, %v327
    %v352 = vadd.f32 %v244, %v328
    %v353 = vadd.f32 %v245, %v329
    %v354 = vadd.f32 %v246, %v330
    %v355 = vadd.f32 %v247, %v331
    %v356 = vadd.f32 %v248, %v332
    %v357 = vadd.f32 %v249, %v333
    %v358 = vadd.f32 %v250, %v334
    %v359 = vadd.f32 %v251, %v335
    %v360 = vld [vmem:[#allocation4] sm:$0xf]
    %v362 = vlaneseq
    %v363 = vshrl.u32 %v362, 7
    %v364 = vsub.s32 0, %v363
    %v365 = vrot.slane %v360, %v364
    %v366 = vlaneseq
    %v367 = vshrl.u32 %v366, 7
    %v368 = vsub.s32 1, %v367
    %v369 = vrot.slane %v360, %v368
    %v370 = vlaneseq
    %v371 = vshrl.u32 %v370, 7
    %v372 = vsub.s32 2, %v371
    %v373 = vrot.slane %v360, %v372
    %v374 = vlaneseq
    %v375 = vshrl.u32 %v374, 7
    %v376 = vsub.s32 3, %v375
    %v377 = vrot.slane %v360, %v376
    %v382 = vadd.f32 %v336, %v365
    %v383 = vadd.f32 %v337, %v369
    %v384 = vadd.f32 %v338, %v373
    %v385 = vadd.f32 %v339, %v377
    %v386 = vadd.f32 %v340, %v365
    %v387 = vadd.f32 %v341, %v369
    %v388 = vadd.f32 %v342, %v373
    %v389 = vadd.f32 %v343, %v377
    %v390 = vadd.f32 %v344, %v365
    %v391 = vadd.f32 %v345, %v369
    %v392 = vadd.f32 %v346, %v373
    %v393 = vadd.f32 %v347, %v377
    %v394 = vadd.f32 %v348, %v365
    %v395 = vadd.f32 %v349, %v369
    %v396 = vadd.f32 %v350, %v373
    %v397 = vadd.f32 %v351, %v377
    %v398 = vadd.f32 %v352, %v365
    %v399 = vadd.f32 %v353, %v369
    %v400 = vadd.f32 %v354, %v373
    %v401 = vadd.f32 %v355, %v377
    %v402 = vadd.f32 %v356, %v365
    %v403 = vadd.f32 %v357, %v369
    %v404 = vadd.f32 %v358, %v373
    %v405 = vadd.f32 %v359, %v377
    %v406 = vld [vmem:[%s1] sm:$0xff]
    %v407 = vld [vmem:[%s2] sm:$0x3]
    %409 = vset.pattern.permute.xlu0 0
    %410 = vperm.xlu0 %409, %v406
    %v411 = vpop.permute.xlu0 %410
    %v413 = vlaneseq
    %v414 = vshrl.u32 %v413, 7
    %v415 = vsub.s32 0, %v414
    %v416 = vrot.slane %v407, %v415
    %v417 = vmul.f32 %v411, %v416
    %v418 = vadd.f32 %v417, 0.0
    %419 = vset.pattern.permute.xlu0 1
    %420 = vperm.xlu0 %419, %v406
    %v421 = vpop.permute.xlu0 %420
    %v423 = vlaneseq
    %v424 = vshrl.u32 %v423, 7
    %v425 = vsub.s32 1, %v424
    %v426 = vrot.slane %v407, %v425
    %v427 = vmul.f32 %v421, %v426
    %v428 = vadd.f32 %v418, %v427
    %v429 = vld [vmem:[#allocation2] sm:$0x1]
    %v431 = vlaneseq
    %v432 = vshrl.u32 %v431, 7
    %v433 = vsub.s32 0, %v432
    %v434 = vrot.slane %v429, %v433
    %v436 = vadd.f32 %v428, %v434
    %v437 = vld [vmem:[#allocation9] sm:$0xff]
    %v438 = vld [vmem:[#allocation9 + $0x8] sm:$0xff]
    %v439 = vld [vmem:[#allocation9 + $0x10] sm:$0xff]
    %v440 = vld [vmem:[#allocation9 + $0x18] sm:$0xff]
    %v441 = vld [vmem:[#allocation9 + $0x20] sm:$0xff]
    %v442 = vld [vmem:[#allocation9 + $0x28] sm:$0xff]
    %v443 = vld [vmem:[#allocation9 + $0x30] sm:$0xff]
    %v444 = vld [vmem:[#allocation9 + $0x38] sm:$0xff]
    %v445 = vld [vmem:[#allocation9 + $0x40] sm:$0xff]
    %v446 = vld [vmem:[#allocation9 + $0x48] sm:$0xff]
    %v447 = vld [vmem:[#allocation9 + $0x50] sm:$0xff]
    %v448 = vld [vmem:[#allocation9 + $0x58] sm:$0xff]
    %v449 = vld [vmem:[#allocation9 + $0x60] sm:$0xff]
    %v450 = vld [vmem:[#allocation9 + $0x68] sm:$0xff]
    %v451 = vld [vmem:[#allocation9 + $0x70] sm:$0xff]
    %v452 = vld [vmem:[#allocation9 + $0x78] sm:$0xff]
    %v453 = vld [vmem:[#allocation10] sm:$0x1]
    %v455 = vlaneseq
    %v456 = vshrl.u32 %v455, 7
    %v457 = vsub.s32 0, %v456
    %v458 = vrot.slane %v453, %v457
    %460 = vmatprep.subr.mxu0 0.0
    %461 = vmatpush1.msra.mxu0 %v437
    %462 = vmatprep.subr.mxu0 0.0
    %463 = vmatpush1.msra.mxu0 %v438
    %464 = vmatprep.subr.mxu0 0.0
    %465 = vmatpush1.msra.mxu0 %v439
    %466 = vmatprep.subr.mxu0 0.0
    %467 = vmatpush1.msra.mxu0 %v440
    %468 = vmatprep.subr.mxu0 0.0
    %469 = vmatpush1.msra.mxu0 %v441
    %470 = vmatprep.subr.mxu0 0.0
    %471 = vmatpush1.msra.mxu0 %v442
    %472 = vmatprep.subr.mxu0 0.0
    %473 = vmatpush1.msra.mxu0 %v443
    %474 = vmatprep.subr.mxu0 0.0
    %475 = vmatpush1.msra.mxu0 %v444
    %476 = vmatprep.subr.mxu0 0.0
    %477 = vmatpush1.msra.mxu0 %v445
    %478 = vmatprep.subr.mxu0 0.0
    %479 = vmatpush1.msra.mxu0 %v446
    %480 = vmatprep.subr.mxu0 0.0
    %481 = vmatpush1.msra.mxu0 %v447
    %482 = vmatprep.subr.mxu0 0.0
    %483 = vmatpush1.msra.mxu0 %v448
    %484 = vmatprep.subr.mxu0 0.0
    %485 = vmatpush1.msra.mxu0 %v449
    %486 = vmatprep.subr.mxu0 0.0
    %487 = vmatpush1.msra.mxu0 %v450
    %488 = vmatprep.subr.mxu0 0.0
    %489 = vmatpush1.msra.mxu0 %v451
    %490 = vmatprep.subr.mxu0 0.0
    %491 = vmatpush1.msra.mxu0 %v452
    %492 = vmatprep.subr.mxu0 0.0
    %493 = vmatpush1.msra.mxu0 0.0
    %494 = vmatprep.subr.mxu0 0.0
    %495 = vmatpush1.msra.mxu0 0.0
    %496 = vmatprep.subr.mxu0 0.0
    %497 = vmatpush1.msra.mxu0 0.0
    %498 = vmatprep.subr.mxu0 0.0
    %499 = vmatpush1.msra.mxu0 0.0
    %500 = vmatprep.subr.mxu0 0.0
    %501 = vmatpush1.msra.mxu0 0.0
    %502 = vmatprep.subr.mxu0 0.0
    %503 = vmatpush1.msra.mxu0 0.0
    %504 = vmatprep.subr.mxu0 0.0
    %505 = vmatpush1.msra.mxu0 0.0
    %506 = vmatprep.subr.mxu0 0.0
    %507 = vmatpush1.msra.mxu0 0.0
    %508 = vmatprep.subr.mxu0 0.0
    %509 = vmatpush1.msra.mxu0 0.0
    %510 = vmatprep.subr.mxu0 0.0
    %511 = vmatpush1.msra.mxu0 0.0
    %512 = vmatprep.subr.mxu0 0.0
    %513 = vmatpush1.msra.mxu0 0.0
    %514 = vmatprep.subr.mxu0 0.0
    %515 = vmatpush1.msra.mxu0 0.0
    %516 = vmatprep.subr.mxu0 0.0
    %517 = vmatpush1.msra.mxu0 0.0
    %518 = vmatprep.subr.mxu0 0.0
    %519 = vmatpush1.msra.mxu0 0.0
    %520 = vmatprep.subr.mxu0 0.0
    %521 = vmatpush1.msra.mxu0 0.0
    %522 = vmatprep.subr.mxu0 0.0
    %523 = vmatpush1.msra.mxu0 0.0
    %524 = vmatprep.mubr.f32.mxu0 0.0
    %525 = vmatmul.mubr.f32.gmra.mrb[0].mxu0 %v436
    %v526 = vpop.f32.mrb[0].mxu0
    %v527 = vadd.f32 %v458, %v526
    %v528 = vpop.f32.mrb[0].mxu0
    %529 = vdwg.mxu0
    %v530 = vld [vmem:[#allocation6] sm:$0xff]
    %v531 = vld [vmem:[#allocation6 + $0x8] sm:$0xff]
    %v532 = vld [vmem:[#allocation6 + $0x10] sm:$0xff]
    %v533 = vld [vmem:[#allocation6 + $0x18] sm:$0xff]
    %v534 = vld [vmem:[#allocation6 + $0x20] sm:$0xff]
    %v535 = vld [vmem:[#allocation6 + $0x28] sm:$0xff]
    %v536 = vld [vmem:[#allocation6 + $0x30] sm:$0xff]
    %v537 = vld [vmem:[#allocation6 + $0x38] sm:$0xff]
    %v538 = vld [vmem:[#allocation6 + $0x40] sm:$0xff]
    %v539 = vld [vmem:[#allocation6 + $0x48] sm:$0xff]
    %v540 = vld [vmem:[#allocation6 + $0x50] sm:$0xff]
    %v541 = vld [vmem:[#allocation6 + $0x58] sm:$0xff]
    %v542 = vld [vmem:[#allocation6 + $0x60] sm:$0xff]
    %v543 = vld [vmem:[#allocation6 + $0x68] sm:$0xff]
    %v544 = vld [vmem:[#allocation6 + $0x70] sm:$0xff]
    %v545 = vld [vmem:[#allocation6 + $0x78] sm:$0xff]
    %v546 = vld [vmem:[#allocation6 + $0x80] sm:$0xff]
    %v547 = vld [vmem:[#allocation6 + $0x88] sm:$0xff]
    %v548 = vld [vmem:[#allocation6 + $0x90] sm:$0xff]
    %v549 = vld [vmem:[#allocation6 + $0x98] sm:$0xff]
    %v550 = vld [vmem:[#allocation6 + $0xa0] sm:$0xff]
    %v551 = vld [vmem:[#allocation6 + $0xa8] sm:$0xff]
    %v552 = vld [vmem:[#allocation6 + $0xb0] sm:$0xff]
    %v553 = vld [vmem:[#allocation6 + $0xb8] sm:$0xff]
    %v554 = vld [vmem:[#allocation6 + $0xc0] sm:$0xff]
    %v555 = vld [vmem:[#allocation6 + $0xc8] sm:$0xff]
    %v556 = vld [vmem:[#allocation6 + $0xd0] sm:$0xff]
    %v557 = vld [vmem:[#allocation6 + $0xd8] sm:$0xff]
    %v558 = vld [vmem:[#allocation6 + $0xe0] sm:$0xff]
    %v559 = vld [vmem:[#allocation6 + $0xe8] sm:$0xff]
    %v560 = vld [vmem:[#allocation6 + $0xf0] sm:$0xff]
    %v561 = vld [vmem:[#allocation6 + $0xf8] sm:$0xff]
    %v562 = vld [vmem:[#allocation6 + $0x100] sm:$0xff]
    %v563 = vld [vmem:[#allocation6 + $0x108] sm:$0xff]
    %v564 = vld [vmem:[#allocation6 + $0x110] sm:$0xff]
    %v565 = vld [vmem:[#allocation6 + $0x118] sm:$0xff]
    %v566 = vld [vmem:[#allocation6 + $0x120] sm:$0xff]
    %v567 = vld [vmem:[#allocation6 + $0x128] sm:$0xff]
    %v568 = vld [vmem:[#allocation6 + $0x130] sm:$0xff]
    %v569 = vld [vmem:[#allocation6 + $0x138] sm:$0xff]
    %v570 = vld [vmem:[#allocation6 + $0x140] sm:$0xff]
    %v571 = vld [vmem:[#allocation6 + $0x148] sm:$0xff]
    %v572 = vld [vmem:[#allocation6 + $0x150] sm:$0xff]
    %v573 = vld [vmem:[#allocation6 + $0x158] sm:$0xff]
    %v574 = vld [vmem:[#allocation6 + $0x160] sm:$0xff]
    %v575 = vld [vmem:[#allocation6 + $0x168] sm:$0xff]
    %v576 = vld [vmem:[#allocation6 + $0x170] sm:$0xff]
    %v577 = vld [vmem:[#allocation6 + $0x178] sm:$0xff]
    %v578 = vld [vmem:[#allocation6 + $0x180] sm:$0xff]
    %v579 = vld [vmem:[#allocation6 + $0x188] sm:$0xff]
    %v580 = vld [vmem:[#allocation6 + $0x190] sm:$0xff]
    %v581 = vld [vmem:[#allocation6 + $0x198] sm:$0xff]
    %v582 = vld [vmem:[#allocation6 + $0x1a0] sm:$0xff]
    %v583 = vld [vmem:[#allocation6 + $0x1a8] sm:$0xff]
    %v584 = vld [vmem:[#allocation6 + $0x1b0] sm:$0xff]
    %v585 = vld [vmem:[#allocation6 + $0x1b8] sm:$0xff]
    %v586 = vld [vmem:[#allocation6 + $0x1c0] sm:$0xff]
    %v587 = vld [vmem:[#allocation6 + $0x1c8] sm:$0xff]
    %v588 = vld [vmem:[#allocation6 + $0x1d0] sm:$0xff]
    %v589 = vld [vmem:[#allocation6 + $0x1d8] sm:$0xff]
    %v590 = vld [vmem:[#allocation6 + $0x1e0] sm:$0xff]
    %v591 = vld [vmem:[#allocation6 + $0x1e8] sm:$0xff]
    %v592 = vld [vmem:[#allocation6 + $0x1f0] sm:$0xff]
    %v593 = vld [vmem:[#allocation6 + $0x1f8] sm:$0xff]
    %594 = vmatprep.subr.mxu0 %v531
    %595 = vmatpush1.msra.mxu0 %v530
    %596 = vmatprep.subr.mxu0 %v535
    %597 = vmatpush1.msra.mxu0 %v534
    %598 = vmatprep.subr.mxu0 %v539
    %599 = vmatpush1.msra.mxu0 %v538
    %600 = vmatprep.subr.mxu0 %v543
    %601 = vmatpush1.msra.mxu0 %v542
    %602 = vmatprep.subr.mxu0 %v547
    %603 = vmatpush1.msra.mxu0 %v546
    %604 = vmatprep.subr.mxu0 %v551
    %605 = vmatpush1.msra.mxu0 %v550
    %606 = vmatprep.subr.mxu0 %v555
    %607 = vmatpush1.msra.mxu0 %v554
    %608 = vmatprep.subr.mxu0 %v559
    %609 = vmatpush1.msra.mxu0 %v558
    %610 = vmatprep.subr.mxu0 %v563
    %611 = vmatpush1.msra.mxu0 %v562
    %612 = vmatprep.subr.mxu0 %v567
    %613 = vmatpush1.msra.mxu0 %v566
    %614 = vmatprep.subr.mxu0 %v571
    %615 = vmatpush1.msra.mxu0 %v570
    %616 = vmatprep.subr.mxu0 %v575
    %617 = vmatpush1.msra.mxu0 %v574
    %618 = vmatprep.subr.mxu0 %v579
    %619 = vmatpush1.msra.mxu0 %v578
    %620 = vmatprep.subr.mxu0 %v583
    %621 = vmatpush1.msra.mxu0 %v582
    %622 = vmatprep.subr.mxu0 %v587
    %623 = vmatpush1.msra.mxu0 %v586
    %624 = vmatprep.subr.mxu0 %v591
    %625 = vmatpush1.msra.mxu0 %v590
    %626 = vmatprep.subr.mxu0 0.0
    %627 = vmatpush1.msra.mxu0 0.0
    %628 = vmatprep.subr.mxu0 0.0
    %629 = vmatpush1.msra.mxu0 0.0
    %630 = vmatprep.subr.mxu0 0.0
    %631 = vmatpush1.msra.mxu0 0.0
    %632 = vmatprep.subr.mxu0 0.0
    %633 = vmatpush1.msra.mxu0 0.0
    %634 = vmatprep.subr.mxu0 0.0
    %635 = vmatpush1.msra.mxu0 0.0
    %636 = vmatprep.subr.mxu0 0.0
    %637 = vmatpush1.msra.mxu0 0.0
    %638 = vmatprep.subr.mxu0 0.0
    %639 = vmatpush1.msra.mxu0 0.0
    %640 = vmatprep.subr.mxu0 0.0
    %641 = vmatpush1.msra.mxu0 0.0
    %642 = vmatprep.subr.mxu0 0.0
    %643 = vmatpush1.msra.mxu0 0.0
    %644 = vmatprep.subr.mxu0 0.0
    %645 = vmatpush1.msra.mxu0 0.0
    %646 = vmatprep.subr.mxu0 0.0
    %647 = vmatpush1.msra.mxu0 0.0
    %648 = vmatprep.subr.mxu0 0.0
    %649 = vmatpush1.msra.mxu0 0.0
    %650 = vmatprep.subr.mxu0 0.0
    %651 = vmatpush1.msra.mxu0 0.0
    %652 = vmatprep.subr.mxu0 0.0
    %653 = vmatpush1.msra.mxu0 0.0
    %654 = vmatprep.subr.mxu0 0.0
    %655 = vmatpush1.msra.mxu0 0.0
    %656 = vmatprep.subr.mxu0 0.0
    %657 = vmatpush1.msra.mxu0 0.0
    %658 = vmatprep.mubr.f32.mxu0 0.0
    %659 = vmatmul.mubr.f32.gmra.mrb[0].mxu0 0.0
    %v660 = vpop.f32.mrb[0].mxu0
    %v661 = vadd.f32 0.0, %v660
    %v662 = vpop.f32.mrb[0].mxu0
    %v663 = vadd.f32 0.0, %v662
    %664 = vdwg.mxu0
    %665 = vmatprep.subr.mxu0 %v533
    %666 = vmatpush1.msra.mxu0 %v532
    %667 = vmatprep.subr.mxu0 %v537
    %668 = vmatpush1.msra.mxu0 %v536
    %669 = vmatprep.subr.mxu0 %v541
    %670 = vmatpush1.msra.mxu0 %v540
    %671 = vmatprep.subr.mxu0 %v545
    %672 = vmatpush1.msra.mxu0 %v544
    %673 = vmatprep.subr.mxu0 %v549
    %674 = vmatpush1.msra.mxu0 %v548
    %675 = vmatprep.subr.mxu0 %v553
    %676 = vmatpush1.msra.mxu0 %v552
    %677 = vmatprep.subr.mxu0 %v557
    %678 = vmatpush1.msra.mxu0 %v556
    %679 = vmatprep.subr.mxu0 %v561
    %680 = vmatpush1.msra.mxu0 %v560
    %681 = vmatprep.subr.mxu0 %v565
    %682 = vmatpush1.msra.mxu0 %v564
    %683 = vmatprep.subr.mxu0 %v569
    %684 = vmatpush1.msra.mxu0 %v568
    %685 = vmatprep.subr.mxu0 %v573
    %686 = vmatpush1.msra.mxu0 %v572
    %687 = vmatprep.subr.mxu0 %v577
    %688 = vmatpush1.msra.mxu0 %v576
    %689 = vmatprep.subr.mxu0 %v581
    %690 = vmatpush1.msra.mxu0 %v580
    %691 = vmatprep.subr.mxu0 %v585
    %692 = vmatpush1.msra.mxu0 %v584
    %693 = vmatprep.subr.mxu0 %v589
    %694 = vmatpush1.msra.mxu0 %v588
    %695 = vmatprep.subr.mxu0 %v593
    %696 = vmatpush1.msra.mxu0 %v592
    %697 = vmatprep.subr.mxu0 0.0
    %698 = vmatpush1.msra.mxu0 0.0
    %699 = vmatprep.subr.mxu0 0.0
    %700 = vmatpush1.msra.mxu0 0.0
    %701 = vmatprep.subr.mxu0 0.0
    %702 = vmatpush1.msra.mxu0 0.0
    %703 = vmatprep.subr.mxu0 0.0
    %704 = vmatpush1.msra.mxu0 0.0
    %705 = vmatprep.subr.mxu0 0.0
    %706 = vmatpush1.msra.mxu0 0.0
    %707 = vmatprep.subr.mxu0 0.0
    %708 = vmatpush1.msra.mxu0 0.0
    %709 = vmatprep.subr.mxu0 0.0
    %710 = vmatpush1.msra.mxu0 0.0
    %711 = vmatprep.subr.mxu0 0.0
    %712 = vmatpush1.msra.mxu0 0.0
    %713 = vmatprep.subr.mxu0 0.0
    %714 = vmatpush1.msra.mxu0 0.0
    %715 = vmatprep.subr.mxu0 0.0
    %716 = vmatpush1.msra.mxu0 0.0
    %717 = vmatprep.subr.mxu0 0.0
    %718 = vmatpush1.msra.mxu0 0.0
    %719 = vmatprep.subr.mxu0 0.0
    %720 = vmatpush1.msra.mxu0 0.0
    %721 = vmatprep.subr.mxu0 0.0
    %722 = vmatpush1.msra.mxu0 0.0
    %723 = vmatprep.subr.mxu0 0.0
    %724 = vmatpush1.msra.mxu0 0.0
    %725 = vmatprep.subr.mxu0 0.0
    %726 = vmatpush1.msra.mxu0 0.0
    %727 = vmatprep.subr.mxu0 0.0
    %728 = vmatpush1.msra.mxu0 0.0
    %729 = vmatprep.mubr.f32.mxu0 0.0
    %730 = vmatmul.mubr.f32.gmra.mrb[0].mxu0 0.0
    %v731 = vpop.f32.mrb[0].mxu0
    %v732 = vadd.f32 0.0, %v731
    %v733 = vpop.f32.mrb[0].mxu0
    %v734 = vadd.f32 0.0, %v733
    %735 = vdwg.mxu0
    %v736 = vadd.f32 %v382, %v661
    %v737 = vadd.f32 %v383, %v663
    %v738 = vadd.f32 %v384, %v732
    %v739 = vadd.f32 %v385, %v734
    %v740 = vxor.u32 %v736, 2147483648
    %v741 = vmul.f32 %v740, 1.442695
    %v742 = vpow.pop %v741
    %v743 = vadd.f32 %v742, 1.0
    %v744 = vrcp.pop %v743
    %v745 = vmul.f32 1.0, %v744
    %v746 = vxor.u32 %v737, 2147483648
    %v747 = vmul.f32 %v746, 1.442695
    %v748 = vpow.pop %v747
    %v749 = vadd.f32 %v748, 1.0
    %v750 = vrcp.pop %v749
    %v751 = vmul.f32 1.0, %v750
    %v752 = vtanh.pop %v738
    %v753 = vxor.u32 %v739, 2147483648
    %v754 = vmul.f32 %v753, 1.442695
    %v755 = vpow.pop %v754
    %v756 = vadd.f32 %v755, 1.0
    %v757 = vrcp.pop %v756
    %v758 = vmul.f32 1.0, %v757
    %v759 = vmul.f32 %v751, 0.0
    %v760 = vmul.f32 %v745, %v752
    %v761 = vadd.f32 %v759, %v760
    %v762 = vtanh.pop %v761
    %v763 = vmul.f32 %v758, %v762
    %764 = vmatprep.subr.mxu0 %v531
    %765 = vmatpush1.msra.mxu0 %v530
    %766 = vmatprep.subr.mxu0 %v535
    %767 = vmatpush1.msra.mxu0 %v534
    %768 = vmatprep.subr.mxu0 %v539
    %769 = vmatpush1.msra.mxu0 %v538
    %770 = vmatprep.subr.mxu0 %v543
    %771 = vmatpush1.msra.mxu0 %v542
    %772 = vmatprep.subr.mxu0 %v547
    %773 = vmatpush1.msra.mxu0 %v546
    %774 = vmatprep.subr.mxu0 %v551
    %775 = vmatpush1.msra.mxu0 %v550
    %776 = vmatprep.subr.mxu0 %v555
    %777 = vmatpush1.msra.mxu0 %v554
    %778 = vmatprep.subr.mxu0 %v559
    %779 = vmatpush1.msra.mxu0 %v558
    %780 = vmatprep.subr.mxu0 %v563
    %781 = vmatpush1.msra.mxu0 %v562
    %782 = vmatprep.subr.mxu0 %v567
    %783 = vmatpush1.msra.mxu0 %v566
    %784 = vmatprep.subr.mxu0 %v571
    %785 = vmatpush1.msra.mxu0 %v570
    %786 = vmatprep.subr.mxu0 %v575
    %787 = vmatpush1.msra.mxu0 %v574
    %788 = vmatprep.subr.mxu0 %v579
    %789 = vmatpush1.msra.mxu0 %v578
    %790 = vmatprep.subr.mxu0 %v583
    %791 = vmatpush1.msra.mxu0 %v582
    %792 = vmatprep.subr.mxu0 %v587
    %793 = vmatpush1.msra.mxu0 %v586
    %794 = vmatprep.subr.mxu0 %v591
    %795 = vmatpush1.msra.mxu0 %v590
    %796 = vmatprep.subr.mxu0 0.0
    %797 = vmatpush1.msra.mxu0 0.0
    %798 = vmatprep.subr.mxu0 0.0
    %799 = vmatpush1.msra.mxu0 0.0
    %800 = vmatprep.subr.mxu0 0.0
    %801 = vmatpush1.msra.mxu0 0.0
    %802 = vmatprep.subr.mxu0 0.0
    %803 = vmatpush1.msra.mxu0 0.0
    %804 = vmatprep.subr.mxu0 0.0
    %805 = vmatpush1.msra.mxu0 0.0
    %806 = vmatprep.subr.mxu0 0.0
    %807 = vmatpush1.msra.mxu0 0.0
    %808 = vmatprep.subr.mxu0 0.0
    %809 = vmatpush1.msra.mxu0 0.0
    %810 = vmatprep.subr.mxu0 0.0
    %811 = vmatpush1.msra.mxu0 0.0
    %812 = vmatprep.subr.mxu0 0.0
    %813 = vmatpush1.msra.mxu0 0.0
    %814 = vmatprep.subr.mxu0 0.0
    %815 = vmatpush1.msra.mxu0 0.0
    %816 = vmatprep.subr.mxu0 0.0
    %817 = vmatpush1.msra.mxu0 0.0
    %818 = vmatprep.subr.mxu0 0.0
    %819 = vmatpush1.msra.mxu0 0.0
    %820 = vmatprep.subr.mxu0 0.0
    %821 = vmatpush1.msra.mxu0 0.0
    %822 = vmatprep.subr.mxu0 0.0
    %823 = vmatpush1.msra.mxu0 0.0
    %824 = vmatprep.subr.mxu0 0.0
    %825 = vmatpush1.msra.mxu0 0.0
    %826 = vmatprep.subr.mxu0 0.0
    %827 = vmatpush1.msra.mxu0 0.0
    %828 = vmatprep.mubr.f32.mxu0 0.0
    %829 = vmatmul.mubr.f32.gmra.mrb[0].mxu0 %v763
    %v830 = vpop.f32.mrb[0].mxu0
    %v831 = vadd.f32 0.0, %v830
    %v832 = vpop.f32.mrb[0].mxu0
    %v833 = vadd.f32 0.0, %v832
    %834 = vdwg.mxu0
    %835 = vmatprep.subr.mxu0 %v533
    %836 = vmatpush1.msra.mxu0 %v532
    %837 = vmatprep.subr.mxu0 %v537
    %838 = vmatpush1.msra.mxu0 %v536
    %839 = vmatprep.subr.mxu0 %v541
    %840 = vmatpush1.msra.mxu0 %v540
    %841 = vmatprep.subr.mxu0 %v545
    %842 = vmatpush1.msra.mxu0 %v544
    %843 = vmatprep.subr.mxu0 %v549
    %844 = vmatpush1.msra.mxu0 %v548
    %845 = vmatprep.subr.mxu0 %v553
    %846 = vmatpush1.msra.mxu0 %v552
    %847 = vmatprep.subr.mxu0 %v557
    %848 = vmatpush1.msra.mxu0 %v556
    %849 = vmatprep.subr.mxu0 %v561
    %850 = vmatpush1.msra.mxu0 %v560
    %851 = vmatprep.subr.mxu0 %v565
    %852 = vmatpush1.msra.mxu0 %v564
    %853 = vmatprep.subr.mxu0 %v569
    %854 = vmatpush1.msra.mxu0 %v568
    %855 = vmatprep.subr.mxu0 %v573
    %856 = vmatpush1.msra.mxu0 %v572
    %857 = vmatprep.subr.mxu0 %v577
    %858 = vmatpush1.msra.mxu0 %v576
    %859 = vmatprep.subr.mxu0 %v581
    %860 = vmatpush1.msra.mxu0 %v580
    %861 = vmatprep.subr.mxu0 %v585
    %862 = vmatpush1.msra.mxu0 %v584
    %863 = vmatprep.subr.mxu0 %v589
    %864 = vmatpush1.msra.mxu0 %v588
    %865 = vmatprep.subr.mxu0 %v593
    %866 = vmatpush1.msra.mxu0 %v592
    %867 = vmatprep.subr.mxu0 0.0
    %868 = vmatpush1.msra.mxu0 0.0
    %869 = vmatprep.subr.mxu0 0.0
    %870 = vmatpush1.msra.mxu0 0.0
    %871 = vmatprep.subr.mxu0 0.0
    %872 = vmatpush1.msra.mxu0 0.0
    %873 = vmatprep.subr.mxu0 0.0
    %874 = vmatpush1.msra.mxu0 0.0
    %875 = vmatprep.subr.mxu0 0.0
    %876 = vmatpush1.msra.mxu0 0.0
    %877 = vmatprep.subr.mxu0 0.0
    %878 = vmatpush1.msra.mxu0 0.0
    %879 = vmatprep.subr.mxu0 0.0
    %880 = vmatpush1.msra.mxu0 0.0
    %881 = vmatprep.subr.mxu0 0.0
    %882 = vmatpush1.msra.mxu0 0.0
    %883 = vmatprep.subr.mxu0 0.0
    %884 = vmatpush1.msra.mxu0 0.0
    %885 = vmatprep.subr.mxu0 0.0
    %886 = vmatpush1.msra.mxu0 0.0
    %887 = vmatprep.subr.mxu0 0.0
    %888 = vmatpush1.msra.mxu0 0.0
    %889 = vmatprep.subr.mxu0 0.0
    %890 = vmatpush1.msra.mxu0 0.0
    %891 = vmatprep.subr.mxu0 0.0
    %892 = vmatpush1.msra.mxu0 0.0
    %893 = vmatprep.subr.mxu0 0.0
    %894 = vmatpush1.msra.mxu0 0.0
    %895 = vmatprep.subr.mxu0 0.0
    %896 = vmatpush1.msra.mxu0 0.0
    %897 = vmatprep.subr.mxu0 0.0
    %898 = vmatpush1.msra.mxu0 0.0
    %899 = vmatprep.mubr.f32.mxu0 0.0
    %900 = vmatmul.mubr.f32.gmra.mrb[0].mxu0 %v763
    %v901 = vpop.f32.mrb[0].mxu0
    %v902 = vadd.f32 0.0, %v901
    %v903 = vpop.f32.mrb[0].mxu0
    %v904 = vadd.f32 0.0, %v903
    %905 = vdwg.mxu0
    %v906 = vadd.f32 %v386, %v831
    %v907 = vadd.f32 %v387, %v833
    %v908 = vadd.f32 %v388, %v902
    %v909 = vadd.f32 %v389, %v904
    %v910 = vxor.u32 %v906, 2147483648
    %v911 = vmul.f32 %v910, 1.442695
    %v912 = vpow.pop %v911
    %v913 = vadd.f32 %v912, 1.0
    %v914 = vrcp.pop %v913
    %v915 = vmul.f32 1.0, %v914
    %v916 = vxor.u32 %v907, 2147483648
    %v917 = vmul.f32 %v916, 1.442695
    %v918 = vpow.pop %v917
    %v919 = vadd.f32 %v918, 1.0
    %v920 = vrcp.pop %v919
    %v921 = vmul.f32 1.0, %v920
    %v922 = vtanh.pop %v908
    %v923 = vxor.u32 %v909, 2147483648
    %v924 = vmul.f32 %v923, 1.442695
    %v925 = vpow.pop %v924
    %v926 = vadd.f32 %v925, 1.0
    %v927 = vrcp.pop %v926
    %v928 = vmul.f32 1.0, %v927
    %v929 = vmul.f32 %v921, %v761
    %v930 = vmul.f32 %v915, %v922
    %v931 = vadd.f32 %v929, %v930
    %v932 = vtanh.pop %v931
    %v933 = vmul.f32 %v928, %v932
    %934 = vmatprep.subr.mxu0 %v531
    %935 = vmatpush1.msra.mxu0 %v530
    %936 = vmatprep.subr.mxu0 %v535
    %937 = vmatpush1.msra.mxu0 %v534
    %938 = vmatprep.subr.mxu0 %v539
    %939 = vmatpush1.msra.mxu0 %v538
    %940 = vmatprep.subr.mxu0 %v543
    %941 = vmatpush1.msra.mxu0 %v542
    %942 = vmatprep.subr.mxu0 %v547
    %943 = vmatpush1.msra.mxu0 %v546
    %944 = vmatprep.subr.mxu0 %v551
    %945 = vmatpush1.msra.mxu0 %v550
    %946 = vmatprep.subr.mxu0 %v555
    %947 = vmatpush1.msra.mxu0 %v554
    %948 = vmatprep.subr.mxu0 %v559
    %949 = vmatpush1.msra.mxu0 %v558
    %950 = vmatprep.subr.mxu0 %v563
    %951 = vmatpush1.msra.mxu0 %v562
    %952 = vmatprep.subr.mxu0 %v567
    %953 = vmatpush1.msra.mxu0 %v566
    %954 = vmatprep.subr.mxu0 %v571
    %955 = vmatpush1.msra.mxu0 %v570
    %956 = vmatprep.subr.mxu0 %v575
    %957 = vmatpush1.msra.mxu0 %v574
    %958 = vmatprep.subr.mxu0 %v579
    %959 = vmatpush1.msra.mxu0 %v578
    %960 = vmatprep.subr.mxu0 %v583
    %961 = vmatpush1.msra.mxu0 %v582
    %962 = vmatprep.subr.mxu0 %v587
    %963 = vmatpush1.msra.mxu0 %v586
    %964 = vmatprep.subr.mxu0 %v591
    %965 = vmatpush1.msra.mxu0 %v590
    %966 = vmatprep.subr.mxu0 0.0
    %967 = vmatpush1.msra.mxu0 0.0
    %968 = vmatprep.subr.mxu0 0.0
    %969 = vmatpush1.msra.mxu0 0.0
    %970 = vmatprep.subr.mxu0 0.0
    %971 = vmatpush1.msra.mxu0 0.0
    %972 = vmatprep.subr.mxu0 0.0
    %973 = vmatpush1.msra.mxu0 0.0
    %974 = vmatprep.subr.mxu0 0.0
    %975 = vmatpush1.msra.mxu0 0.0
    %976 = vmatprep.subr.mxu0 0.0
    %977 = vmatpush1.msra.mxu0 0.0
    %978 = vmatprep.subr.mxu0 0.0
    %979 = vmatpush1.msra.mxu0 0.0
    %980 = vmatprep.subr.mxu0 0.0
    %981 = vmatpush1.msra.mxu0 0.0
    %982 = vmatprep.subr.mxu0 0.0
    %983 = vmatpush1.msra.mxu0 0.0
    %984 = vmatprep.subr.mxu0 0.0
    %985 = vmatpush1.msra.mxu0 0.0
    %986 = vmatprep.subr.mxu0 0.0
    %987 = vmatpush1.msra.mxu0 0.0
    %988 = vmatprep.subr.mxu0 0.0
    %989 = vmatpush1.msra.mxu0 0.0
    %990 = vmatprep.subr.mxu0 0.0
    %991 = vmatpush1.msra.mxu0 0.0
    %992 = vmatprep.subr.mxu0 0.0
    %993 = vmatpush1.msra.mxu0 0.0
    %994 = vmatprep.subr.mxu0 0.0
    %995 = vmatpush1.msra.mxu0 0.0
    %996 = vmatprep.subr.mxu0 0.0
    %997 = vmatpush1.msra.mxu0 0.0
    %998 = vmatprep.mubr.f32.mxu0 0.0
    %999 = vmatmul.mubr.f32.gmra.mrb[0].mxu0 %v933
    %v1000 = vpop.f32.mrb[0].mxu0
    %v1001 = vadd.f32 0.0, %v1000
    %v1002 = vpop.f32.mrb[0].mxu0
    %v1003 = vadd.f32 0.0, %v1002
    %1004 = vdwg.mxu0
    %1005 = vmatprep.subr.mxu0 %v533
    %1006 = vmatpush1.msra.mxu0 %v532
    %1007 = vmatprep.subr.mxu0 %v537
    %1008 = vmatpush1.msra.mxu0 %v536
    %1009 = vmatprep.subr.mxu0 %v541
    %1010 = vmatpush1.msra.mxu0 %v540
    %1011 = vmatprep.subr.mxu0 %v545
    %1012 = vmatpush1.msra.mxu0 %v544
    %1013 = vmatprep.subr.mxu0 %v549
    %1014 = vmatpush1.msra.mxu0 %v548
    %1015 = vmatprep.subr.mxu0 %v553
    %1016 = vmatpush1.msra.mxu0 %v552
    %1017 = vmatprep.subr.mxu0 %v557
    %1018 = vmatpush1.msra.mxu0 %v556
    %1019 = vmatprep.subr.mxu0 %v561
    %1020 = vmatpush1.msra.mxu0 %v560
    %1021 = vmatprep.subr.mxu0 %v565
    %1022 = vmatpush1.msra.mxu0 %v564
    %1023 = vmatprep.subr.mxu0 %v569
    %1024 = vmatpush1.msra.mxu0 %v568
    %1025 = vmatprep.subr.mxu0 %v573
    %1026 = vmatpush1.msra.mxu0 %v572
    %1027 = vmatprep.subr.mxu0 %v577
    %1028 = vmatpush1.msra.mxu0 %v576
    %1029 = vmatprep.subr.mxu0 %v581
    %1030 = vmatpush1.msra.mxu0 %v580
    %1031 = vmatprep.subr.mxu0 %v585
    %1032 = vmatpush1.msra.mxu0 %v584
    %1033 = vmatprep.subr.mxu0 %v589
    %1034 = vmatpush1.msra.mxu0 %v588
    %1035 = vmatprep.subr.mxu0 %v593
    %1036 = vmatpush1.msra.mxu0 %v592
    %1037 = vmatprep.subr.mxu0 0.0
    %1038 = vmatpush1.msra.mxu0 0.0
    %1039 = vmatprep.subr.mxu0 0.0
    %1040 = vmatpush1.msra.mxu0 0.0
    %1041 = vmatprep.subr.mxu0 0.0
    %1042 = vmatpush1.msra.mxu0 0.0
    %1043 = vmatprep.subr.mxu0 0.0
    %1044 = vmatpush1.msra.mxu0 0.0
    %1045 = vmatprep.subr.mxu0 0.0
    %1046 = vmatpush1.msra.mxu0 0.0
    %1047 = vmatprep.subr.mxu0 0.0
    %1048 = vmatpush1.msra.mxu0 0.0
    %1049 = vmatprep.subr.mxu0 0.0
    %1050 = vmatpush1.msra.mxu0 0.0
    %1051 = vmatprep.subr.mxu0 0.0
    %1052 = vmatpush1.msra.mxu0 0.0
    %1053 = vmatprep.subr.mxu0 0.0
    %1054 = vmatpush1.msra.mxu0 0.0
    %1055 = vmatprep.subr.mxu0 0.0
    %1056 = vmatpush1.msra.mxu0 0.0
    %1057 = vmatprep.subr.mxu0 0.0
    %1058 = vmatpush1.msra.mxu0 0.0
    %1059 = vmatprep.subr.mxu0 0.0
    %1060 = vmatpush1.msra.mxu0 0.0
    %1061 = vmatprep.subr.mxu0 0.0
    %1062 = vmatpush1.msra.mxu0 0.0
    %1063 = vmatprep.subr.mxu0 0.0
    %1064 = vmatpush1.msra.mxu0 0.0
    %1065 = vmatprep.subr.mxu0 0.0
    %1066 = vmatpush1.msra.mxu0 0.0
    %1067 = vmatprep.subr.mxu0 0.0
    %1068 = vmatpush1.msra.mxu0 0.0
    %1069 = vmatprep.mubr.f32.mxu0 0.0
    %1070 = vmatmul.mubr.f32.gmra.mrb[0].mxu0 %v933
    %v1071 = vpop.f32.mrb[0].mxu0
    %v1072 = vadd.f32 0.0, %v1071
    %v1073 = vpop.f32.mrb[0].mxu0
    %v1074 = vadd.f32 0.0, %v1073
    %1075 = vdwg.mxu0
    %v1076 = vadd.f32 %v390, %v1001
    %v1077 = vadd.f32 %v391, %v1003
    %v1078 = vadd.f32 %v392, %v1072
    %v1079 = vadd.f32 %v393, %v1074
    %v1080 = vxor.u32 %v1076, 2147483648
    %v1081 = vmul.f32 %v1080, 1.442695
    %v1082 = vpow.pop %v1081
    %v1083 = vadd.f32 %v1082, 1.0
    %v1084 = vrcp.pop %v1083
    %v1085 = vmul.f32 1.0, %v1084
    %v1086 = vxor.u32 %v1077, 2147483648
    %v1087 = vmul.f32 %v1086, 1.442695
    %v1088 = vpow.pop %v1087
    %v1089 = vadd.f32 %v1088, 1.0
    %v1090 = vrcp.pop %v1089
    %v1091 = vmul.f32 1.0, %v1090
    %v1092 = vtanh.pop %v1078
    %v1093 = vxor.u32 %v1079, 2147483648
    %v1094 = vmul.f32 %v1093, 1.442695
    %v1095 = vpow.pop %v1094
    %v1096 = vadd.f32 %v1095, 1.0
    %v1097 = vrcp.pop %v1096
    %v1098 = vmul.f32 1.0, %v1097
    %v1099 = vmul.f32 %v1091, %v931
    %v1100 = vmul.f32 %v1085, %v1092
    %v1101 = vadd.f32 %v1099, %v1100
    %v1102 = vtanh.pop %v1101
    %v1103 = vmul.f32 %v1098, %v1102
    %1104 = vmatprep.subr.mxu0 %v531
    %1105 = vmatpush1.msra.mxu0 %v530
    %1106 = vmatprep.subr.mxu0 %v535
    %1107 = vmatpush1.msra.mxu0 %v534
    %1108 = vmatprep.subr.mxu0 %v539
    %1109 = vmatpush1.msra.mxu0 %v538
    %1110 = vmatprep.subr.mxu0 %v543
    %1111 = vmatpush1.msra.mxu0 %v542
    %1112 = vmatprep.subr.mxu0 %v547
    %1113 = vmatpush1.msra.mxu0 %v546
    %1114 = vmatprep.subr.mxu0 %v551
    %1115 = vmatpush1.msra.mxu0 %v550
    %1116 = vmatprep.subr.mxu0 %v555
    %1117 = vmatpush1.msra.mxu0 %v554
    %1118 = vmatprep.subr.mxu0 %v559
    %1119 = vmatpush1.msra.mxu0 %v558
    %1120 = vmatprep.subr.mxu0 %v563
    %1121 = vmatpush1.msra.mxu0 %v562
    %1122 = vmatprep.subr.mxu0 %v567
    %1123 = vmatpush1.msra.mxu0 %v566
    %1124 = vmatprep.subr.mxu0 %v571
    %1125 = vmatpush1.msra.mxu0 %v570
    %1126 = vmatprep.subr.mxu0 %v575
    %1127 = vmatpush1.msra.mxu0 %v574
    %1128 = vmatprep.subr.mxu0 %v579
    %1129 = vmatpush1.msra.mxu0 %v578
    %1130 = vmatprep.subr.mxu0 %v583
    %1131 = vmatpush1.msra.mxu0 %v582
    %1132 = vmatprep.subr.mxu0 %v587
    %1133 = vmatpush1.msra.mxu0 %v586
    %1134 = vmatprep.subr.mxu0 %v591
    %1135 = vmatpush1.msra.mxu0 %v590
    %1136 = vmatprep.subr.mxu0 0.0
    %1137 = vmatpush1.msra.mxu0 0.0
    %1138 = vmatprep.subr.mxu0 0.0
    %1139 = vmatpush1.msra.mxu0 0.0
    %1140 = vmatprep.subr.mxu0 0.0
    %1141 = vmatpush1.msra.mxu0 0.0
    %1142 = vmatprep.subr.mxu0 0.0
    %1143 = vmatpush1.msra.mxu0 0.0
    %1144 = vmatprep.subr.mxu0 0.0
    %1145 = vmatpush1.msra.mxu0 0.0
    %1146 = vmatprep.subr.mxu0 0.0
    %1147 = vmatpush1.msra.mxu0 0.0
    %1148 = vmatprep.subr.mxu0 0.0
    %1149 = vmatpush1.msra.mxu0 0.0
    %1150 = vmatprep.subr.mxu0 0.0
    %1151 = vmatpush1.msra.mxu0 0.0
    %1152 = vmatprep.subr.mxu0 0.0
    %1153 = vmatpush1.msra.mxu0 0.0
    %1154 = vmatprep.subr.mxu0 0.0
    %1155 = vmatpush1.msra.mxu0 0.0
    %1156 = vmatprep.subr.mxu0 0.0
    %1157 = vmatpush1.msra.mxu0 0.0
    %1158 = vmatprep.subr.mxu0 0.0
    %1159 = vmatpush1.msra.mxu0 0.0
    %1160 = vmatprep.subr.mxu0 0.0
    %1161 = vmatpush1.msra.mxu0 0.0
    %1162 = vmatprep.subr.mxu0 0.0
    %1163 = vmatpush1.msra.mxu0 0.0
    %1164 = vmatprep.subr.mxu0 0.0
    %1165 = vmatpush1.msra.mxu0 0.0
    %1166 = vmatprep.subr.mxu0 0.0
    %1167 = vmatpush1.msra.mxu0 0.0
    %1168 = vmatprep.mubr.f32.mxu0 0.0
    %1169 = vmatmul.mubr.f32.gmra.mrb[0].mxu0 %v1103
    %v1170 = vpop.f32.mrb[0].mxu0
    %v1171 = vadd.f32 0.0, %v1170
    %v1172 = vpop.f32.mrb[0].mxu0
    %v1173 = vadd.f32 0.0, %v1172
    %1174 = vdwg.mxu0
    %1175 = vmatprep.subr.mxu0 %v533
    %1176 = vmatpush1.msra.mxu0 %v532
    %1177 = vmatprep.subr.mxu0 %v537
    %1178 = vmatpush1.msra.mxu0 %v536
    %1179 = vmatprep.subr.mxu0 %v541
    %1180 = vmatpush1.msra.mxu0 %v540
    %1181 = vmatprep.subr.mxu0 %v545
    %1182 = vmatpush1.msra.mxu0 %v544
    %1183 = vmatprep.subr.mxu0 %v549
    %1184 = vmatpush1.msra.mxu0 %v548
    %1185 = vmatprep.subr.mxu0 %v553
    %1186 = vmatpush1.msra.mxu0 %v552
    %1187 = vmatprep.subr.mxu0 %v557
    %1188 = vmatpush1.msra.mxu0 %v556
    %1189 = vmatprep.subr.mxu0 %v561
    %1190 = vmatpush1.msra.mxu0 %v560
    %1191 = vmatprep.subr.mxu0 %v565
    %1192 = vmatpush1.msra.mxu0 %v564
    %1193 = vmatprep.subr.mxu0 %v569
    %1194 = vmatpush1.msra.mxu0 %v568
    %1195 = vmatprep.subr.mxu0 %v573
    %1196 = vmatpush1.msra.mxu0 %v572
    %1197 = vmatprep.subr.mxu0 %v577
    %1198 = vmatpush1.msra.mxu0 %v576
    %1199 = vmatprep.subr.mxu0 %v581
    %1200 = vmatpush1.msra.mxu0 %v580
    %1201 = vmatprep.subr.mxu0 %v585
    %1202 = vmatpush1.msra.mxu0 %v584
    %1203 = vmatprep.subr.mxu0 %v589
    %1204 = vmatpush1.msra.mxu0 %v588
    %1205 = vmatprep.subr.mxu0 %v593
    %1206 = vmatpush1.msra.mxu0 %v592
    %1207 = vmatprep.subr.mxu0 0.0
    %1208 = vmatpush1.msra.mxu0 0.0
    %1209 = vmatprep.subr.mxu0 0.0
    %1210 = vmatpush1.msra.mxu0 0.0
    %1211 = vmatprep.subr.mxu0 0.0
    %1212 = vmatpush1.msra.mxu0 0.0
    %1213 = vmatprep.subr.mxu0 0.0
    %1214 = vmatpush1.msra.mxu0 0.0
    %1215 = vmatprep.subr.mxu0 0.0
    %1216 = vmatpush1.msra.mxu0 0.0
    %1217 = vmatprep.subr.mxu0 0.0
    %1218 = vmatpush1.msra.mxu0 0.0
    %1219 = vmatprep.subr.mxu0 0.0
    %1220 = vmatpush1.msra.mxu0 0.0
    %1221 = vmatprep.subr.mxu0 0.0
    %1222 = vmatpush1.msra.mxu0 0.0
    %1223 = vmatprep.subr.mxu0 0.0
    %1224 = vmatpush1.msra.mxu0 0.0
    %1225 = vmatprep.subr.mxu0 0.0
    %1226 = vmatpush1.msra.mxu0 0.0
    %1227 = vmatprep.subr.mxu0 0.0
    %1228 = vmatpush1.msra.mxu0 0.0
    %1229 = vmatprep.subr.mxu0 0.0
    %1230 = vmatpush1.msra.mxu0 0.0
    %1231 = vmatprep.subr.mxu0 0.0
    %1232 = vmatpush1.msra.mxu0 0.0
    %1233 = vmatprep.subr.mxu0 0.0
    %1234 = vmatpush1.msra.mxu0 0.0
    %1235 = vmatprep.subr.mxu0 0.0
    %1236 = vmatpush1.msra.mxu0 0.0
    %1237 = vmatprep.subr.mxu0 0.0
    %1238 = vmatpush1.msra.mxu0 0.0
    %1239 = vmatprep.mubr.f32.mxu0 0.0
    %1240 = vmatmul.mubr.f32.gmra.mrb[0].mxu0 %v1103
    %v1241 = vpop.f32.mrb[0].mxu0
    %v1242 = vadd.f32 0.0, %v1241
    %v1243 = vpop.f32.mrb[0].mxu0
    %v1244 = vadd.f32 0.0, %v1243
    %1245 = vdwg.mxu0
    %v1246 = vadd.f32 %v394, %v1171
    %v1247 = vadd.f32 %v395, %v1173
    %v1248 = vadd.f32 %v396, %v1242
    %v1249 = vadd.f32 %v397, %v1244
    %v1250 = vxor.u32 %v1246, 2147483648
    %v1251 = vmul.f32 %v1250, 1.442695
    %v1252 = vpow.pop %v1251
    %v1253 = vadd.f32 %v1252, 1.0
    %v1254 = vrcp.pop %v1253
    %v1255 = vmul.f32 1.0, %v1254
    %v1256 = vxor.u32 %v1247, 2147483648
    %v1257 = vmul.f32 %v1256, 1.442695
    %v1258 = vpow.pop %v1257
    %v1259 = vadd.f32 %v1258, 1.0
    %v1260 = vrcp.pop %v1259
    %v1261 = vmul.f32 1.0, %v1260
    %v1262 = vtanh.pop %v1248
    %v1263 = vxor.u32 %v1249, 2147483648
    %v1264 = vmul.f32 %v1263, 1.442695
    %v1265 = vpow.pop %v1264
    %v1266 = vadd.f32 %v1265, 1.0
    %v1267 = vrcp.pop %v1266
    %v1268 = vmul.f32 1.0, %v1267
    %v1269 = vmul.f32 %v1261, %v1101
    %v1270 = vmul.f32 %v1255, %v1262
    %v1271 = vadd.f32 %v1269, %v1270
    %v1272 = vtanh.pop %v1271
    %v1273 = vmul.f32 %v1268, %v1272
    %1274 = vmatprep.subr.mxu0 %v531
    %1275 = vmatpush1.msra.mxu0 %v530
    %1276 = vmatprep.subr.mxu0 %v535
    %1277 = vmatpush1.msra.mxu0 %v534
    %1278 = vmatprep.subr.mxu0 %v539
    %1279 = vmatpush1.msra.mxu0 %v538
    %1280 = vmatprep.subr.mxu0 %v543
    %1281 = vmatpush1.msra.mxu0 %v542
    %1282 = vmatprep.subr.mxu0 %v547
    %1283 = vmatpush1.msra.mxu0 %v546
    %1284 = vmatprep.subr.mxu0 %v551
    %1285 = vmatpush1.msra.mxu0 %v550
    %1286 = vmatprep.subr.mxu0 %v555
    %1287 = vmatpush1.msra.mxu0 %v554
    %1288 = vmatprep.subr.mxu0 %v559
    %1289 = vmatpush1.msra.mxu0 %v558
    %1290 = vmatprep.subr.mxu0 %v563
    %1291 = vmatpush1.msra.mxu0 %v562
    %1292 = vmatprep.subr.mxu0 %v567
    %1293 = vmatpush1.msra.mxu0 %v566
    %1294 = vmatprep.subr.mxu0 %v571
    %1295 = vmatpush1.msra.mxu0 %v570
    %1296 = vmatprep.subr.mxu0 %v575
    %1297 = vmatpush1.msra.mxu0 %v574
    %1298 = vmatprep.subr.mxu0 %v579
    %1299 = vmatpush1.msra.mxu0 %v578
    %1300 = vmatprep.subr.mxu0 %v583
    %1301 = vmatpush1.msra.mxu0 %v582
    %1302 = vmatprep.subr.mxu0 %v587
    %1303 = vmatpush1.msra.mxu0 %v586
    %1304 = vmatprep.subr.mxu0 %v591
    %1305 = vmatpush1.msra.mxu0 %v590
    %1306 = vmatprep.subr.mxu0 0.0
    %1307 = vmatpush1.msra.mxu0 0.0
    %1308 = vmatprep.subr.mxu0 0.0
    %1309 = vmatpush1.msra.mxu0 0.0
    %1310 = vmatprep.subr.mxu0 0.0
    %1311 = vmatpush1.msra.mxu0 0.0
    %1312 = vmatprep.subr.mxu0 0.0
    %1313 = vmatpush1.msra.mxu0 0.0
    %1314 = vmatprep.subr.mxu0 0.0
    %1315 = vmatpush1.msra.mxu0 0.0
    %1316 = vmatprep.subr.mxu0 0.0
    %1317 = vmatpush1.msra.mxu0 0.0
    %1318 = vmatprep.subr.mxu0 0.0
    %1319 = vmatpush1.msra.mxu0 0.0
    %1320 = vmatprep.subr.mxu0 0.0
    %1321 = vmatpush1.msra.mxu0 0.0
    %1322 = vmatprep.subr.mxu0 0.0
    %1323 = vmatpush1.msra.mxu0 0.0
    %1324 = vmatprep.subr.mxu0 0.0
    %1325 = vmatpush1.msra.mxu0 0.0
    %1326 = vmatprep.subr.mxu0 0.0
    %1327 = vmatpush1.msra.mxu0 0.0
    %1328 = vmatprep.subr.mxu0 0.0
    %1329 = vmatpush1.msra.mxu0 0.0
    %1330 = vmatprep.subr.mxu0 0.0
    %1331 = vmatpush1.msra.mxu0 0.0
    %1332 = vmatprep.subr.mxu0 0.0
    %1333 = vmatpush1.msra.mxu0 0.0
    %1334 = vmatprep.subr.mxu0 0.0
    %1335 = vmatpush1.msra.mxu0 0.0
    %1336 = vmatprep.subr.mxu0 0.0
    %1337 = vmatpush1.msra.mxu0 0.0
    %1338 = vmatprep.mubr.f32.mxu0 0.0
    %1339 = vmatmul.mubr.f32.gmra.mrb[0].mxu0 %v1273
    %v1340 = vpop.f32.mrb[0].mxu0
    %v1341 = vadd.f32 0.0, %v1340
    %v1342 = vpop.f32.mrb[0].mxu0
    %v1343 = vadd.f32 0.0, %v1342
    %1344 = vdwg.mxu0
    %1345 = vmatprep.subr.mxu0 %v533
    %1346 = vmatpush1.msra.mxu0 %v532
    %1347 = vmatprep.subr.mxu0 %v537
    %1348 = vmatpush1.msra.mxu0 %v536
    %1349 = vmatprep.subr.mxu0 %v541
    %1350 = vmatpush1.msra.mxu0 %v540
    %1351 = vmatprep.subr.mxu0 %v545
    %1352 = vmatpush1.msra.mxu0 %v544
    %1353 = vmatprep.subr.mxu0 %v549
    %1354 = vmatpush1.msra.mxu0 %v548
    %1355 = vmatprep.subr.mxu0 %v553
    %1356 = vmatpush1.msra.mxu0 %v552
    %1357 = vmatprep.subr.mxu0 %v557
    %1358 = vmatpush1.msra.mxu0 %v556
    %1359 = vmatprep.subr.mxu0 %v561
    %1360 = vmatpush1.msra.mxu0 %v560
    %1361 = vmatprep.subr.mxu0 %v565
    %1362 = vmatpush1.msra.mxu0 %v564
    %1363 = vmatprep.subr.mxu0 %v569
    %1364 = vmatpush1.msra.mxu0 %v568
    %1365 = vmatprep.subr.mxu0 %v573
    %1366 = vmatpush1.msra.mxu0 %v572
    %1367 = vmatprep.subr.mxu0 %v577
    %1368 = vmatpush1.msra.mxu0 %v576
    %1369 = vmatprep.subr.mxu0 %v581
    %1370 = vmatpush1.msra.mxu0 %v580
    %1371 = vmatprep.subr.mxu0 %v585
    %1372 = vmatpush1.msra.mxu0 %v584
    %1373 = vmatprep.subr.mxu0 %v589
    %1374 = vmatpush1.msra.mxu0 %v588
    %1375 = vmatprep.subr.mxu0 %v593
    %1376 = vmatpush1.msra.mxu0 %v592
    %1377 = vmatprep.subr.mxu0 0.0
    %1378 = vmatpush1.msra.mxu0 0.0
    %1379 = vmatprep.subr.mxu0 0.0
    %1380 = vmatpush1.msra.mxu0 0.0
    %1381 = vmatprep.subr.mxu0 0.0
    %1382 = vmatpush1.msra.mxu0 0.0
    %1383 = vmatprep.subr.mxu0 0.0
    %1384 = vmatpush1.msra.mxu0 0.0
    %1385 = vmatprep.subr.mxu0 0.0
    %1386 = vmatpush1.msra.mxu0 0.0
    %1387 = vmatprep.subr.mxu0 0.0
    %1388 = vmatpush1.msra.mxu0 0.0
    %1389 = vmatprep.subr.mxu0 0.0
    %1390 = vmatpush1.msra.mxu0 0.0
    %1391 = vmatprep.subr.mxu0 0.0
    %1392 = vmatpush1.msra.mxu0 0.0
    %1393 = vmatprep.subr.mxu0 0.0
    %1394 = vmatpush1.msra.mxu0 0.0
    %1395 = vmatprep.subr.mxu0 0.0
    %1396 = vmatpush1.msra.mxu0 0.0
    %1397 = vmatprep.subr.mxu0 0.0
    %1398 = vmatpush1.msra.mxu0 0.0
    %1399 = vmatprep.subr.mxu0 0.0
    %1400 = vmatpush1.msra.mxu0 0.0
    %1401 = vmatprep.subr.mxu0 0.0
    %1402 = vmatpush1.msra.mxu0 0.0
    %1403 = vmatprep.subr.mxu0 0.0
    %1404 = vmatpush1.msra.mxu0 0.0
    %1405 = vmatprep.subr.mxu0 0.0
    %1406 = vmatpush1.msra.mxu0 0.0
    %1407 = vmatprep.subr.mxu0 0.0
    %1408 = vmatpush1.msra.mxu0 0.0
    %1409 = vmatprep.mubr.f32.mxu0 0.0
    %1410 = vmatmul.mubr.f32.gmra.mrb[0].mxu0 %v1273
    %v1411 = vpop.f32.mrb[0].mxu0
    %v1412 = vadd.f32 0.0, %v1411
    %v1413 = vpop.f32.mrb[0].mxu0
    %v1414 = vadd.f32 0.0, %v1413
    %1415 = vdwg.mxu0
    %v1416 = vadd.f32 %v398, %v1341
    %v1417 = vadd.f32 %v399, %v1343
    %v1418 = vadd.f32 %v400, %v1412
    %v1419 = vadd.f32 %v401, %v1414
    %v1420 = vxor.u32 %v1416, 2147483648
    %v1421 = vmul.f32 %v1420, 1.442695
    %v1422 = vpow.pop %v1421
    %v1423 = vadd.f32 %v1422, 1.0
    %v1424 = vrcp.pop %v1423
    %v1425 = vmul.f32 1.0, %v1424
    %v1426 = vxor.u32 %v1417, 2147483648
    %v1427 = vmul.f32 %v1426, 1.442695
    %v1428 = vpow.pop %v1427
    %v1429 = vadd.f32 %v1428, 1.0
    %v1430 = vrcp.pop %v1429
    %v1431 = vmul.f32 1.0, %v1430
    %v1432 = vtanh.pop %v1418
    %v1433 = vxor.u32 %v1419, 2147483648
    %v1434 = vmul.f32 %v1433, 1.442695
    %v1435 = vpow.pop %v1434
    %v1436 = vadd.f32 %v1435, 1.0
    %v1437 = vrcp.pop %v1436
    %v1438 = vmul.f32 1.0, %v1437
    %v1439 = vmul.f32 %v1431, %v1271
    %v1440 = vmul.f32 %v1425, %v1432
    %v1441 = vadd.f32 %v1439, %v1440
    %v1442 = vtanh.pop %v1441
    %v1443 = vmul.f32 %v1438, %v1442
    %1444 = vmatprep.subr.mxu0 %v531
    %1445 = vmatpush1.msra.mxu0 %v530
    %1446 = vmatprep.subr.mxu0 %v535
    %1447 = vmatpush1.msra.mxu0 %v534
    %1448 = vmatprep.subr.mxu0 %v539
    %1449 = vmatpush1.msra.mxu0 %v538
    %1450 = vmatprep.subr.mxu0 %v543
    %1451 = vmatpush1.msra.mxu0 %v542
    %1452 = vmatprep.subr.mxu0 %v547
    %1453 = vmatpush1.msra.mxu0 %v546
    %1454 = vmatprep.subr.mxu0 %v551
    %1455 = vmatpush1.msra.mxu0 %v550
    %1456 = vmatprep.subr.mxu0 %v555
    %1457 = vmatpush1.msra.mxu0 %v554
    %1458 = vmatprep.subr.mxu0 %v559
    %1459 = vmatpush1.msra.mxu0 %v558
    %1460 = vmatprep.subr.mxu0 %v563
    %1461 = vmatpush1.msra.mxu0 %v562
    %1462 = vmatprep.subr.mxu0 %v567
    %1463 = vmatpush1.msra.mxu0 %v566
    %1464 = vmatprep.subr.mxu0 %v571
    %1465 = vmatpush1.msra.mxu0 %v570
    %1466 = vmatprep.subr.mxu0 %v575
    %1467 = vmatpush1.msra.mxu0 %v574
    %1468 = vmatprep.subr.mxu0 %v579
    %1469 = vmatpush1.msra.mxu0 %v578
    %1470 = vmatprep.subr.mxu0 %v583
    %1471 = vmatpush1.msra.mxu0 %v582
    %1472 = vmatprep.subr.mxu0 %v587
    %1473 = vmatpush1.msra.mxu0 %v586
    %1474 = vmatprep.subr.mxu0 %v591
    %1475 = vmatpush1.msra.mxu0 %v590
    %1476 = vmatprep.subr.mxu0 0.0
    %1477 = vmatpush1.msra.mxu0 0.0
    %1478 = vmatprep.subr.mxu0 0.0
    %1479 = vmatpush1.msra.mxu0 0.0
    %1480 = vmatprep.subr.mxu0 0.0
    %1481 = vmatpush1.msra.mxu0 0.0
    %1482 = vmatprep.subr.mxu0 0.0
    %1483 = vmatpush1.msra.mxu0 0.0
    %1484 = vmatprep.subr.mxu0 0.0
    %1485 = vmatpush1.msra.mxu0 0.0
    %1486 = vmatprep.subr.mxu0 0.0
    %1487 = vmatpush1.msra.mxu0 0.0
    %1488 = vmatprep.subr.mxu0 0.0
    %1489 = vmatpush1.msra.mxu0 0.0
    %1490 = vmatprep.subr.mxu0 0.0
    %1491 = vmatpush1.msra.mxu0 0.0
    %1492 = vmatprep.subr.mxu0 0.0
    %1493 = vmatpush1.msra.mxu0 0.0
    %1494 = vmatprep.subr.mxu0 0.0
    %1495 = vmatpush1.msra.mxu0 0.0
    %1496 = vmatprep.subr.mxu0 0.0
    %1497 = vmatpush1.msra.mxu0 0.0
    %1498 = vmatprep.subr.mxu0 0.0
    %1499 = vmatpush1.msra.mxu0 0.0
    %1500 = vmatprep.subr.mxu0 0.0
    %1501 = vmatpush1.msra.mxu0 0.0
    %1502 = vmatprep.subr.mxu0 0.0
    %1503 = vmatpush1.msra.mxu0 0.0
    %1504 = vmatprep.subr.mxu0 0.0
    %1505 = vmatpush1.msra.mxu0 0.0
    %1506 = vmatprep.subr.mxu0 0.0
    %1507 = vmatpush1.msra.mxu0 0.0
    %1508 = vmatprep.mubr.f32.mxu0 0.0
    %1509 = vmatmul.mubr.f32.gmra.mrb[0].mxu0 %v1443
    %v1510 = vpop.f32.mrb[0].mxu0
    %v1511 = vadd.f32 0.0, %v1510
    %v1512 = vpop.f32.mrb[0].mxu0
    %v1513 = vadd.f32 0.0, %v1512
    %1514 = vdwg.mxu0
    %1515 = vmatprep.subr.mxu0 %v533
    %1516 = vmatpush1.msra.mxu0 %v532
    %1517 = vmatprep.subr.mxu0 %v537
    %1518 = vmatpush1.msra.mxu0 %v536
    %1519 = vmatprep.subr.mxu0 %v541
    %1520 = vmatpush1.msra.mxu0 %v540
    %1521 = vmatprep.subr.mxu0 %v545
    %1522 = vmatpush1.msra.mxu0 %v544
    %1523 = vmatprep.subr.mxu0 %v549
    %1524 = vmatpush1.msra.mxu0 %v548
    %1525 = vmatprep.subr.mxu0 %v553
    %1526 = vmatpush1.msra.mxu0 %v552
    %1527 = vmatprep.subr.mxu0 %v557
    %1528 = vmatpush1.msra.mxu0 %v556
    %1529 = vmatprep.subr.mxu0 %v561
    %1530 = vmatpush1.msra.mxu0 %v560
    %1531 = vmatprep.subr.mxu0 %v565
    %1532 = vmatpush1.msra.mxu0 %v564
    %1533 = vmatprep.subr.mxu0 %v569
    %1534 = vmatpush1.msra.mxu0 %v568
    %1535 = vmatprep.subr.mxu0 %v573
    %1536 = vmatpush1.msra.mxu0 %v572
    %1537 = vmatprep.subr.mxu0 %v577
    %1538 = vmatpush1.msra.mxu0 %v576
    %1539 = vmatprep.subr.mxu0 %v581
    %1540 = vmatpush1.msra.mxu0 %v580
    %1541 = vmatprep.subr.mxu0 %v585
    %1542 = vmatpush1.msra.mxu0 %v584
    %1543 = vmatprep.subr.mxu0 %v589
    %1544 = vmatpush1.msra.mxu0 %v588
    %1545 = vmatprep.subr.mxu0 %v593
    %1546 = vmatpush1.msra.mxu0 %v592
    %1547 = vmatprep.subr.mxu0 0.0
    %1548 = vmatpush1.msra.mxu0 0.0
    %1549 = vmatprep.subr.mxu0 0.0
    %1550 = vmatpush1.msra.mxu0 0.0
    %1551 = vmatprep.subr.mxu0 0.0
    %1552 = vmatpush1.msra.mxu0 0.0
    %1553 = vmatprep.subr.mxu0 0.0
    %1554 = vmatpush1.msra.mxu0 0.0
    %1555 = vmatprep.subr.mxu0 0.0
    %1556 = vmatpush1.msra.mxu0 0.0
    %1557 = vmatprep.subr.mxu0 0.0
    %1558 = vmatpush1.msra.mxu0 0.0
    %1559 = vmatprep.subr.mxu0 0.0
    %1560 = vmatpush1.msra.mxu0 0.0
    %1561 = vmatprep.subr.mxu0 0.0
    %1562 = vmatpush1.msra.mxu0 0.0
    %1563 = vmatprep.subr.mxu0 0.0
    %1564 = vmatpush1.msra.mxu0 0.0
    %1565 = vmatprep.subr.mxu0 0.0
    %1566 = vmatpush1.msra.mxu0 0.0
    %1567 = vmatprep.subr.mxu0 0.0
    %1568 = vmatpush1.msra.mxu0 0.0
    %1569 = vmatprep.subr.mxu0 0.0
    %1570 = vmatpush1.msra.mxu0 0.0
    %1571 = vmatprep.subr.mxu0 0.0
    %1572 = vmatpush1.msra.mxu0 0.0
    %1573 = vmatprep.subr.mxu0 0.0
    %1574 = vmatpush1.msra.mxu0 0.0
    %1575 = vmatprep.subr.mxu0 0.0
    %1576 = vmatpush1.msra.mxu0 0.0
    %1577 = vmatprep.subr.mxu0 0.0
    %1578 = vmatpush1.msra.mxu0 0.0
    %1579 = vmatprep.mubr.f32.mxu0 0.0
    %1580 = vmatmul.mubr.f32.gmra.mrb[0].mxu0 %v1443
    %v1581 = vpop.f32.mrb[0].mxu0
    %v1582 = vadd.f32 0.0, %v1581
    %v1583 = vpop.f32.mrb[0].mxu0
    %v1584 = vadd.f32 0.0, %v1583
    %1585 = vdwg.mxu0
    %v1586 = vadd.f32 %v402, %v1511
    %v1587 = vadd.f32 %v403, %v1513
    %v1588 = vadd.f32 %v404, %v1582
    %v1589 = vadd.f32 %v405, %v1584
    %v1590 = vxor.u32 %v1586, 2147483648
    %v1591 = vmul.f32 %v1590, 1.442695
    %v1592 = vpow.pop %v1591
    %v1593 = vadd.f32 %v1592, 1.0
    %v1594 = vrcp.pop %v1593
    %v1595 = vmul.f32 1.0, %v1594
    %v1596 = vxor.u32 %v1587, 2147483648
    %v1597 = vmul.f32 %v1596, 1.442695
    %v1598 = vpow.pop %v1597
    %v1599 = vadd.f32 %v1598, 1.0
    %v1600 = vrcp.pop %v1599
    %v1601 = vmul.f32 1.0, %v1600
    %v1602 = vtanh.pop %v1588
    %v1603 = vxor.u32 %v1589, 2147483648
    %v1604 = vmul.f32 %v1603, 1.442695
    %v1605 = vpow.pop %v1604
    %v1606 = vadd.f32 %v1605, 1.0
    %v1607 = vrcp.pop %v1606
    %v1608 = vmul.f32 1.0, %v1607
    %v1609 = vmul.f32 %v1601, %v1441
    %v1610 = vmul.f32 %v1595, %v1602
    %v1611 = vadd.f32 %v1609, %v1610
    %v1612 = vtanh.pop %v1611
    %v1613 = vmul.f32 %v1608, %v1612
    %v1614 = vld [vmem:[#allocation7] sm:$0xff]
    %v1615 = vld [vmem:[#allocation7 + $0x8] sm:$0xff]
    %v1616 = vld [vmem:[#allocation7 + $0x10] sm:$0xff]
    %v1617 = vld [vmem:[#allocation7 + $0x18] sm:$0xff]
    %v1618 = vld [vmem:[#allocation7 + $0x20] sm:$0xff]
    %v1619 = vld [vmem:[#allocation7 + $0x28] sm:$0xff]
    %v1620 = vld [vmem:[#allocation7 + $0x30] sm:$0xff]
    %v1621 = vld [vmem:[#allocation7 + $0x38] sm:$0xff]
    %v1622 = vld [vmem:[#allocation7 + $0x40] sm:$0xff]
    %v1623 = vld [vmem:[#allocation7 + $0x48] sm:$0xff]
    %v1624 = vld [vmem:[#allocation7 + $0x50] sm:$0xff]
    %v1625 = vld [vmem:[#allocation7 + $0x58] sm:$0xff]
    %v1626 = vld [vmem:[#allocation7 + $0x60] sm:$0xff]
    %v1627 = vld [vmem:[#allocation7 + $0x68] sm:$0xff]
    %v1628 = vld [vmem:[#allocation7 + $0x70] sm:$0xff]
    %v1629 = vld [vmem:[#allocation7 + $0x78] sm:$0xff]
    %1630 = vmatprep.subr.mxu0 0.0
    %1631 = vmatpush1.msra.mxu0 %v1614
    %1632 = vmatprep.subr.mxu0 0.0
    %1633 = vmatpush1.msra.mxu0 %v1615
    %1634 = vmatprep.subr.mxu0 0.0
    %1635 = vmatpush1.msra.mxu0 %v1616
    %1636 = vmatprep.subr.mxu0 0.0
    %1637 = vmatpush1.msra.mxu0 %v1617
    %1638 = vmatprep.subr.mxu0 0.0
    %1639 = vmatpush1.msra.mxu0 %v1618
    %1640 = vmatprep.subr.mxu0 0.0
    %1641 = vmatpush1.msra.mxu0 %v1619
    %1642 = vmatprep.subr.mxu0 0.0
    %1643 = vmatpush1.msra.mxu0 %v1620
    %1644 = vmatprep.subr.mxu0 0.0
    %1645 = vmatpush1.msra.mxu0 %v1621
    %1646 = vmatprep.subr.mxu0 0.0
    %1647 = vmatpush1.msra.mxu0 %v1622
    %1648 = vmatprep.subr.mxu0 0.0
    %1649 = vmatpush1.msra.mxu0 %v1623
    %1650 = vmatprep.subr.mxu0 0.0
    %1651 = vmatpush1.msra.mxu0 %v1624
    %1652 = vmatprep.subr.mxu0 0.0
    %1653 = vmatpush1.msra.mxu0 %v1625
    %1654 = vmatprep.subr.mxu0 0.0
    %1655 = vmatpush1.msra.mxu0 %v1626
    %1656 = vmatprep.subr.mxu0 0.0
    %1657 = vmatpush1.msra.mxu0 %v1627
    %1658 = vmatprep.subr.mxu0 0.0
    %1659 = vmatpush1.msra.mxu0 %v1628
    %1660 = vmatprep.subr.mxu0 0.0
    %1661 = vmatpush1.msra.mxu0 %v1629
    %1662 = vmatprep.subr.mxu0 0.0
    %1663 = vmatpush1.msra.mxu0 0.0
    %1664 = vmatprep.subr.mxu0 0.0
    %1665 = vmatpush1.msra.mxu0 0.0
    %1666 = vmatprep.subr.mxu0 0.0
    %1667 = vmatpush1.msra.mxu0 0.0
    %1668 = vmatprep.subr.mxu0 0.0
    %1669 = vmatpush1.msra.mxu0 0.0
    %1670 = vmatprep.subr.mxu0 0.0
    %1671 = vmatpush1.msra.mxu0 0.0
    %1672 = vmatprep.subr.mxu0 0.0
    %1673 = vmatpush1.msra.mxu0 0.0
    %1674 = vmatprep.subr.mxu0 0.0
    %1675 = vmatpush1.msra.mxu0 0.0
    %1676 = vmatprep.subr.mxu0 0.0
    %1677 = vmatpush1.msra.mxu0 0.0
    %1678 = vmatprep.subr.mxu0 0.0
    %1679 = vmatpush1.msra.mxu0 0.0
    %1680 = vmatprep.subr.mxu0 0.0
    %1681 = vmatpush1.msra.mxu0 0.0
    %1682 = vmatprep.subr.mxu0 0.0
    %1683 = vmatpush1.msra.mxu0 0.0
    %1684 = vmatprep.subr.mxu0 0.0
    %1685 = vmatpush1.msra.mxu0 0.0
    %1686 = vmatprep.subr.mxu0 0.0
    %1687 = vmatpush1.msra.mxu0 0.0
    %1688 = vmatprep.subr.mxu0 0.0
    %1689 = vmatpush1.msra.mxu0 0.0
    %1690 = vmatprep.subr.mxu0 0.0
    %1691 = vmatpush1.msra.mxu0 0.0
    %1692 = vmatprep.subr.mxu0 0.0
    %1693 = vmatpush1.msra.mxu0 0.0
    %1694 = vmatprep.mubr.f32.mxu0 0.0
    %1695 = vmatmul.mubr.f32.gmra.mrb[0].mxu0 %v763
    %v1696 = vpop.f32.mrb[0].mxu0
    %v1697 = vadd.f32 0.0, %v1696
    %v1698 = vpop.f32.mrb[0].mxu0
    %1699 = vmatprep.mubr.f32.mxu0 0.0
    %1700 = vmatmul.mubr.f32.gmra.mrb[0].mxu0 %v933
    %v1701 = vpop.f32.mrb[0].mxu0
    %v1702 = vadd.f32 0.0, %v1701
    %v1703 = vpop.f32.mrb[0].mxu0
    %1704 = vmatprep.mubr.f32.mxu0 0.0
    %1705 = vmatmul.mubr.f32.gmra.mrb[0].mxu0 %v1103
    %v1706 = vpop.f32.mrb[0].mxu0
    %v1707 = vadd.f32 0.0, %v1706
    %v1708 = vpop.f32.mrb[0].mxu0
    %1709 = vmatprep.mubr.f32.mxu0 0.0
    %1710 = vmatmul.mubr.f32.gmra.mrb[0].mxu0 %v1273
    %v1711 = vpop.f32.mrb[0].mxu0
    %v1712 = vadd.f32 0.0, %v1711
    %v1713 = vpop.f32.mrb[0].mxu0
    %1714 = vmatprep.mubr.f32.mxu0 0.0
    %1715 = vmatmul.mubr.f32.gmra.mrb[0].mxu0 %v1443
    %v1716 = vpop.f32.mrb[0].mxu0
    %v1717 = vadd.f32 0.0, %v1716
    %v1718 = vpop.f32.mrb[0].mxu0
    %1719 = vmatprep.mubr.f32.mxu0 0.0
    %1720 = vmatmul.mubr.f32.gmra.mrb[0].mxu0 %v1613
    %v1721 = vpop.f32.mrb[0].mxu0
    %v1722 = vadd.f32 0.0, %v1721
    %v1723 = vpop.f32.mrb[0].mxu0
    %1724 = vdwg.mxu0
    %v1725 = vadd.f32 %v1697, %v527
    %v1726 = vadd.f32 %v1702, %v527
    %v1727 = vadd.f32 %v1707, %v527
    %v1728 = vadd.f32 %v1712, %v527
    %v1729 = vadd.f32 %v1717, %v527
    %v1730 = vadd.f32 %v1722, %v527
    %v1731 = vmax.f32 %v1725, 0.0
    %v1732 = vmax.f32 %v1726, 0.0
    %v1733 = vmax.f32 %v1727, 0.0
    %v1734 = vmax.f32 %v1728, 0.0
    %v1735 = vmax.f32 %v1729, 0.0
    %v1736 = vmax.f32 %v1730, 0.0
    %v1737 = vld [vmem:[%s10] sm:$0xff]
    %v1738 = vld [vmem:[%s10 + $0x8] sm:$0xff]
    %v1739 = vld [vmem:[%s10 + $0x10] sm:$0xff]
    %v1740 = vld [vmem:[%s10 + $0x18] sm:$0xff]
    %v1741 = vld [vmem:[%s10 + $0x20] sm:$0xff]
    %v1742 = vld [vmem:[%s10 + $0x28] sm:$0xff]
    %v1743 = vld [vmem:[%s10 + $0x30] sm:$0xff]
    %v1744 = vld [vmem:[%s10 + $0x38] sm:$0xff]
    %v1745 = vld [vmem:[%s10 + $0x40] sm:$0xff]
    %v1746 = vld [vmem:[%s10 + $0x48] sm:$0xff]
    %v1747 = vld [vmem:[%s10 + $0x50] sm:$0xff]
    %v1748 = vld [vmem:[%s10 + $0x58] sm:$0xff]
    %v1749 = vld [vmem:[%s10 + $0x60] sm:$0xff]
    %v1750 = vld [vmem:[%s10 + $0x68] sm:$0xff]
    %v1751 = vld [vmem:[%s10 + $0x70] sm:$0xff]
    %v1752 = vld [vmem:[%s10 + $0x78] sm:$0xff]
    %v1753 = vld [vmem:[#allocation12] sm:$0x1]
    %v1755 = vlaneseq
    %v1756 = vshrl.u32 %v1755, 7
    %v1757 = vsub.s32 0, %v1756
    %v1758 = vrot.slane %v1753, %v1757
    %1760 = vmatprep.subr.mxu0 0.0
    %1761 = vmatpush1.msra.mxu0 %v1737
    %1762 = vmatprep.subr.mxu0 0.0
    %1763 = vmatpush1.msra.mxu0 %v1738
    %1764 = vmatprep.subr.mxu0 0.0
    %1765 = vmatpush1.msra.mxu0 %v1739
    %1766 = vmatprep.subr.mxu0 0.0
    %1767 = vmatpush1.msra.mxu0 %v1740
    %1768 = vmatprep.subr.mxu0 0.0
    %1769 = vmatpush1.msra.mxu0 %v1741
    %1770 = vmatprep.subr.mxu0 0.0
    %1771 = vmatpush1.msra.mxu0 %v1742
    %1772 = vmatprep.subr.mxu0 0.0
    %1773 = vmatpush1.msra.mxu0 %v1743
    %1774 = vmatprep.subr.mxu0 0.0
    %1775 = vmatpush1.msra.mxu0 %v1744
    %1776 = vmatprep.subr.mxu0 0.0
    %1777 = vmatpush1.msra.mxu0 %v1745
    %1778 = vmatprep.subr.mxu0 0.0
    %1779 = vmatpush1.msra.mxu0 %v1746
    %1780 = vmatprep.subr.mxu0 0.0
    %1781 = vmatpush1.msra.mxu0 %v1747
    %1782 = vmatprep.subr.mxu0 0.0
    %1783 = vmatpush1.msra.mxu0 %v1748
    %1784 = vmatprep.subr.mxu0 0.0
    %1785 = vmatpush1.msra.mxu0 %v1749
    %1786 = vmatprep.subr.mxu0 0.0
    %1787 = vmatpush1.msra.mxu0 %v1750
    %1788 = vmatprep.subr.mxu0 0.0
    %1789 = vmatpush1.msra.mxu0 %v1751
    %1790 = vmatprep.subr.mxu0 0.0
    %1791 = vmatpush1.msra.mxu0 %v1752
    %1792 = vmatprep.subr.mxu0 0.0
    %1793 = vmatpush1.msra.mxu0 0.0
    %1794 = vmatprep.subr.mxu0 0.0
    %1795 = vmatpush1.msra.mxu0 0.0
    %1796 = vmatprep.subr.mxu0 0.0
    %1797 = vmatpush1.msra.mxu0 0.0
    %1798 = vmatprep.subr.mxu0 0.0
    %1799 = vmatpush1.msra.mxu0 0.0
    %1800 = vmatprep.subr.mxu0 0.0
    %1801 = vmatpush1.msra.mxu0 0.0
    %1802 = vmatprep.subr.mxu0 0.0
    %1803 = vmatpush1.msra.mxu0 0.0
    %1804 = vmatprep.subr.mxu0 0.0
    %1805 = vmatpush1.msra.mxu0 0.0
    %1806 = vmatprep.subr.mxu0 0.0
    %1807 = vmatpush1.msra.mxu0 0.0
    %1808 = vmatprep.subr.mxu0 0.0
    %1809 = vmatpush1.msra.mxu0 0.0
    %1810 = vmatprep.subr.mxu0 0.0
    %1811 = vmatpush1.msra.mxu0 0.0
    %1812 = vmatprep.subr.mxu0 0.0
    %1813 = vmatpush1.msra.mxu0 0.0
    %1814 = vmatprep.subr.mxu0 0.0
    %1815 = vmatpush1.msra.mxu0 0.0
    %1816 = vmatprep.subr.mxu0 0.0
    %1817 = vmatpush1.msra.mxu0 0.0
    %1818 = vmatprep.subr.mxu0 0.0
    %1819 = vmatpush1.msra.mxu0 0.0
    %1820 = vmatprep.subr.mxu0 0.0
    %1821 = vmatpush1.msra.mxu0 0.0
    %1822 = vmatprep.subr.mxu0 0.0
    %1823 = vmatpush1.msra.mxu0 0.0
    %1824 = vmatprep.mubr.f32.mxu0 0.0
    %1825 = vmatmul.mubr.f32.gmra.mrb[0].mxu0 %v1731
    %v1826 = vpop.f32.mrb[0].mxu0
    %v1827 = vadd.f32 %v1758, %v1826
    %v1828 = vpop.f32.mrb[0].mxu0
    %1829 = vmatprep.mubr.f32.mxu0 0.0
    %1830 = vmatmul.mubr.f32.gmra.mrb[0].mxu0 %v1732
    %v1831 = vpop.f32.mrb[0].mxu0
    %v1832 = vadd.f32 %v1758, %v1831
    %v1833 = vpop.f32.mrb[0].mxu0
    %1834 = vmatprep.mubr.f32.mxu0 0.0
    %1835 = vmatmul.mubr.f32.gmra.mrb[0].mxu0 %v1733
    %v1836 = vpop.f32.mrb[0].mxu0
    %v1837 = vadd.f32 %v1758, %v1836
    %v1838 = vpop.f32.mrb[0].mxu0
    %1839 = vmatprep.mubr.f32.mxu0 0.0
    %1840 = vmatmul.mubr.f32.gmra.mrb[0].mxu0 %v1734
    %v1841 = vpop.f32.mrb[0].mxu0
    %v1842 = vadd.f32 %v1758, %v1841
    %v1843 = vpop.f32.mrb[0].mxu0
    %1844 = vmatprep.mubr.f32.mxu0 0.0
    %1845 = vmatmul.mubr.f32.gmra.mrb[0].mxu0 %v1735
    %v1846 = vpop.f32.mrb[0].mxu0
    %v1847 = vadd.f32 %v1758, %v1846
    %v1848 = vpop.f32.mrb[0].mxu0
    %1849 = vmatprep.mubr.f32.mxu0 0.0
    %1850 = vmatmul.mubr.f32.gmra.mrb[0].mxu0 %v1736
    %v1851 = vpop.f32.mrb[0].mxu0
    %v1852 = vadd.f32 %v1758, %v1851
    %v1853 = vpop.f32.mrb[0].mxu0
    %1854 = vdwg.mxu0
    %1855 = vst [vmem:[%s13] sm:$0xff] %v1731
    %1856 = vst [vmem:[%s12] sm:$0xff] %v1827
    %1857 = vst [vmem:[%s13 + $0x8] sm:$0xff] %v1732
    %1858 = vst [vmem:[%s12 + $0x8] sm:$0xff] %v1832
    %1859 = vst [vmem:[%s13 + $0x10] sm:$0xff] %v1733
    %1860 = vst [vmem:[%s12 + $0x10] sm:$0xff] %v1837
    %1861 = vst [vmem:[%s13 + $0x18] sm:$0xff] %v1734
    %1862 = vst [vmem:[%s12 + $0x18] sm:$0xff] %v1842
    %1863 = vst [vmem:[%s13 + $0x20] sm:$0xff] %v1735
    %1864 = vst [vmem:[%s12 + $0x20] sm:$0xff] %v1847
    %1865 = vst [vmem:[%s13 + $0x28] sm:$0xff] %v1736
    %1866 = vst [vmem:[%s12 + $0x28] sm:$0xff] %v1852
    // Predicated region
    $region78: #{motion_lstm.1} parent=1 // pred_check
      _
    $region79: #{motion_lstm.1} parent=1 // pred_check_branch
      %1868 = sbr.rel (0) target = $region81
    $region80: #{motion_lstm.1} parent=1 // pred_region
      _
    $region81: #{motion_lstm.1} parent=1 // pred_fallthru
      _
    // Predicated region
    $region82: #{motion_lstm.1} parent=1 // pred_check
      _
    $region83: #{motion_lstm.1} parent=1 // pred_check_branch
      %1870 = sbr.rel (0) target = $region85
    $region84: #{motion_lstm.1} parent=1 // pred_region
      _
    $region85: #{motion_lstm.1} parent=1 // pred_fallthru
      _
    // Predicated region
    $region86: #{motion_lstm.1} parent=1 // pred_check
      _
    $region87: #{motion_lstm.1} parent=1 // pred_check_branch
      %1872 = sbr.rel (0) target = $region89
    $region88: #{motion_lstm.1} parent=1 // pred_region
      _
    $region89: #{motion_lstm.1} parent=1 // pred_fallthru
      _
    // Predicated region
    $region90: #{motion_lstm.1} parent=1 // pred_check
      _
    $region91: #{motion_lstm.1} parent=1 // pred_check_branch
      %1874 = sbr.rel (0) target = $region93
    $region92: #{motion_lstm.1} parent=1 // pred_region
      _
    $region93: #{motion_lstm.1} parent=1 // pred_fallthru
      _
    %1875 = vsyncpa [#allocation3], 1
    %1876 = vsyncpa [#allocation5], 1
    %1877 = vsyncpa [#allocation8], 1
    %1878 = vsyncpa [#allocation11], 1

</llo_original>
